<compile_context>
chip_gen: v7x
topology: tpu7x:2x2x1
jax: 0.10.0
libtpu: 0.0.40
codegen_flags: <defaults>
</compile_context>

<pallas_src>
import jax
import jax.numpy as jnp
from jax.experimental import pallas as pl
from jax.experimental.pallas import tpu as pltpu

B, CIN, H, W = 2, 4, 16, 16
CSEG = 2
NCLS = 8
C_TOT = CSEG + CIN            # infer channels + image channels stacked for ROI
P = B * H * W                 # lane-dense pixel axis for the segmentation head

HEAD_END = int(H * 0.15)      # 2
UPPER_END = int(H * 0.6)      # 9


# ----------------------------------------------------------------------------
# Kernel A: segmentation = 1x1 conv (as one MXU matmul) + 2-channel softmax
# ----------------------------------------------------------------------------
def _seg_softmax_kernel(x_ref, w_ref, b_ref, out_ref):
    # x_ref: (CIN, P) VMEM ; w_ref: (CSEG, CIN) VMEM ; b_ref: (CSEG, 1) VMEM
    logits = jnp.dot(w_ref[...], x_ref[...],
                     preferred_element_type=jnp.float32) + b_ref[...]   # (CSEG, P)
    l0 = logits[0:1, :]
    l1 = logits[1:2, :]
    m = jnp.maximum(l0, l1)
    e0 = jnp.exp(l0 - m)
    e1 = jnp.exp(l1 - m)
    inv = pl.reciprocal(e0 + e1, approx=True)
    out_ref[...] = jnp.concatenate([e0 * inv, e1 * inv], axis=0)        # (CSEG, P)


def seg_softmax(x, w, b):
    # Lane-dense layout: (B,CIN,H,W) -> (CIN, B*H*W); P=512 = 4 full 128-lane vregs.
    x_t = jnp.transpose(x, (1, 0, 2, 3)).reshape(CIN, P)
    out = pl.pallas_call(
        _seg_softmax_kernel,
        out_shape=jax.ShapeDtypeStruct((CSEG, P), jnp.float32),
        in_specs=[pl.BlockSpec(memory_space=pltpu.MemorySpace.VMEM)] * 3,
        out_specs=pl.BlockSpec(memory_space=pltpu.MemorySpace.VMEM),
    )(x_t, w, b.reshape(CSEG, 1))
    return jnp.transpose(out.reshape(CSEG, B, H, W), (1, 0, 2, 3))       # (B,CSEG,H,W)


# ----------------------------------------------------------------------------
# Kernel B: fused ROI crop+bilinear resize + selective-attention gate +
#           foreground weighting + global-average-pool + linear classifier
# ----------------------------------------------------------------------------
def _roi_gate_cls_kernel(img_ref, wyblk_ref, wxT_ref, region_ref,
                         wclsT_ref, bcls_ref, out_ref):
    # img_ref:   (B, C_TOT*H, W)       rows = [inf0 | inf1 | x0 .. x3] blocks of H
    # wyblk_ref: (B, C_TOT*H, C_TOT*H) block-diag row-resize matrix (per batch)
    # wxT_ref:   (B, W, W)             column-resize matrix, transposed
    # region_ref:(3, H)                head/upper/lower row-average matrix (1/count)
    # wclsT_ref: (NCLS, CIN*H)         classifier weights with 1/(H*W) GAP folded in
    # bcls_ref:  (NCLS, 1)
    # out_ref:   (NCLS, B)
    region = region_ref[...]
    wclsT = wclsT_ref[...]
    bcls = bcls_ref[...]

    cols = []
    for b in range(B):
        # --- ROI crop + bilinear resize for all C_TOT channels in 2 matmuls ---
        t = jnp.dot(img_ref[b], wxT_ref[b],
                    preferred_element_type=jnp.float32)                 # (C_TOT*H, W)
        pooled = jnp.dot(wyblk_ref[b], t,
                         preferred_element_type=jnp.float32)            # (C_TOT*H, W)

        inf0 = pooled[0:H, :]                                           # (H, W)
        inf1 = pooled[H:2 * H, :]                                       # (H, W)
        px = pooled[2 * H:, :]                                          # (CIN*H, W)

        # --- selective attention gate: argmax over 2 channels + region means ---
        pr = (inf1 > inf0).astype(jnp.float32)                          # (H, W)
        means = jnp.sum(jnp.dot(region, pr, preferred_element_type=jnp.float32),
                        axis=1, keepdims=True)                          # (3, 1)
        hm = means[0:1, :]
        um = means[1:2, :]
        lm = means[2:3, :]
        gate_ok = ((hm >= 0.3) & (hm <= 0.6) &
                   (um >= 0.6) & (um <= 0.9) &
                   (lm >= 0.4) & (lm <= 0.6))                           # (1, 1)
        g = gate_ok.astype(jnp.float32)                                 # (1, 1)

        # --- foreground weighting (gate off -> fore == 1.0, as in the reference) ---
        fore = jnp.where(inf1 >= 0.2, jnp.float32(1.0), 0.8 + inf1)
        fore = jnp.clip(fore, 0.0, 1.0)
        fore = g * fore + (1.0 - g)                                     # (H, W)
        fore_full = jnp.concatenate([fore] * CIN, axis=0)               # (CIN*H, W)
        attn_x = fore_full * px                                         # (CIN*H, W)

        # --- GAP + linear classifier (GAP folded into wclsT in the wrapper) ---
        prod = jnp.dot(wclsT, attn_x, preferred_element_type=jnp.float32)  # (NCLS, W)
        cols.append(jnp.sum(prod, axis=1, keepdims=True) + bcls)           # (NCLS, 1)

    out_ref[...] = jnp.concatenate(cols, axis=1)                        # (NCLS, B)


def roi_gate_classify(img_flat, wyblk, wxT, region_mat, wclsT, bcls):
    return pl.pallas_call(
        _roi_gate_cls_kernel,
        out_shape=jax.ShapeDtypeStruct((NCLS, B), jnp.float32),
        in_specs=[pl.BlockSpec(memory_space=pltpu.MemorySpace.VMEM)] * 6,
        out_specs=pl.BlockSpec(memory_space=pltpu.MemorySpace.VMEM),
    )(img_flat, wyblk, wxT, region_mat, wclsT, bcls)


# ----------------------------------------------------------------------------
# Plain-JAX glue: masks_to_boxes, bilinear interpolation matrices, constants.
# ----------------------------------------------------------------------------
def _masks_to_boxes(m):
    # m: (B, H, W) bool -> x1, y1, x2, y2 (inclusive max coords, torchvision style).
    # An all-background mask falls back to a (near) full-image box.
    hh, ww = m.shape[1], m.shape[2]
    row_any = jnp.any(m, axis=2)
    col_any = jnp.any(m, axis=1)
    y1 = jnp.argmax(row_any, axis=1).astype(jnp.int32)
    y2 = (hh - 1 - jnp.argmax(row_any[:, ::-1], axis=1)).astype(jnp.int32)
    x1 = jnp.argmax(col_any, axis=1).astype(jnp.int32)
    x2 = (ww - 1 - jnp.argmax(col_any[:, ::-1], axis=1)).astype(jnp.int32)
    return x1, y1, x2, y2


def _interp_matrix(lo, hi, full):
    # Bilinear (align_corners=False) resize of rows/cols [lo, hi) to `full`,
    # expressed as a (full, full) matrix over the uncropped axis.  crop = hi - lo
    # matches the reference's exclusive slice pred[:, y1:y2, x1:x2].
    # TODO(synk): torchvision TF.resize antialias semantics are not reproduced;
    # this matches F.interpolate(mode='bilinear', align_corners=False).
    crop_i = jnp.maximum(hi - lo, 1)            # guard degenerate boxes
    crop_f = crop_i.astype(jnp.float32)
    i = jnp.arange(full, dtype=jnp.float32)
    src = (i + 0.5) * (crop_f / full) - 0.5
    src = jnp.clip(src, 0.0, crop_f - 1.0)
    i0f = jnp.floor(src)
    frac = src - i0f
    i0 = i0f.astype(jnp.int32)
    i1 = jnp.minimum(i0 + 1, crop_i - 1)
    oh0 = jax.nn.one_hot(lo + i0, full, dtype=jnp.float32)
    oh1 = jax.nn.one_hot(lo + i1, full, dtype=jnp.float32)
    return (1.0 - frac)[:, None] * oh0 + frac[:, None] * oh1


def _region_matrix():
    r = jnp.arange(H)
    head = jnp.where(r < HEAD_END, 1.0 / (HEAD_END * W), 0.0)
    upper = jnp.where((r >= HEAD_END) & (r < UPPER_END),
                      1.0 / ((UPPER_END - HEAD_END) * W), 0.0)
    lower = jnp.where(r >= UPPER_END, 1.0 / ((H - UPPER_END) * W), 0.0)
    return jnp.stack([head, upper, lower]).astype(jnp.float32)          # (3, H)


# ----------------------------------------------------------------------------
# Full RBSG-Net forward
# ----------------------------------------------------------------------------
def rbsg_forward(x, params):
    # segmentation + softmax (Pallas kernel A)
    infer = seg_softmax(x, params["seg_w"], params["seg_b"])            # (B,CSEG,H,W)

    # ROI boxes from mask channel 1 >= 0.5; build per-batch bilinear matrices.
    mask = infer[:, 1, :, :] >= 0.5
    x1, y1, x2, y2 = _masks_to_boxes(mask)
    wy = jax.vmap(lambda lo, hi: _interp_matrix(lo, hi, H))(y1, y2)     # (B, H, H)
    wx = jax.vmap(lambda lo, hi: _interp_matrix(lo, hi, W))(x1, x2)     # (B, W, W)
    wxT = jnp.transpose(wx, (0, 2, 1))

    # Block-diagonal Wy so all C_TOT channels resize in one matmul per batch.
    eye = jnp.eye(C_TOT, dtype=jnp.float32)
    wyblk = (eye[None, :, None, :, None] * wy[:, None, :, None, :]
             ).reshape(B, C_TOT * H, C_TOT * H)

    # Stack [infer | x] along channels; flatten (C,H) -> C*H rows (no transpose).
    img_flat = jnp.concatenate([infer, x], axis=1).reshape(B, C_TOT * H, W)

    # Fold the 1/(H*W) global-average-pool into the classifier weights.
    region_mat = _region_matrix()
    wclsT = jnp.repeat(params["cls_w"], H, axis=1) / float(H * W)       # (NCLS, CIN*H)
    bcls = params["cls_b"].reshape(NCLS, 1)

    # fused ROI + gate + classify (Pallas kernel B)
    logits = roi_gate_classify(img_flat, wyblk, wxT, region_mat, wclsT, bcls)
    return logits.T                                                     # (B, NCLS)


def init_params():
    k = jax.random.PRNGKey(0)
    k1, k2, k3, k4 = jax.random.split(k, 4)
    return {
        "seg_w": jax.random.normal(k1, (CSEG, CIN), jnp.float32) * 0.5,
        "seg_b": jax.random.normal(k2, (CSEG,), jnp.float32) * 0.1,
        "cls_w": jax.random.normal(k3, (NCLS, CIN), jnp.float32) * 0.5,
        "cls_b": jax.random.normal(k4, (NCLS,), jnp.float32) * 0.1,
    }


if __name__ == "__main__":
    key = jax.random.PRNGKey(0)
    params = init_params()
    x = jax.random.normal(jax.random.fold_in(key, 7), (B, CIN, H, W), jnp.float32)

    pred = jax.jit(rbsg_forward)(x, params)
    pred = jax.block_until_ready(pred)

    assert pred.shape == (B, NCLS), pred.shape
    assert bool(jnp.all(jnp.isfinite(pred)))
    print("KERNEL_OK")
</pallas_src>

<mosaic_0001>
module attributes {stable_mosaic.version = 11 : i64} {
  func.func @_seg_softmax_kernel(%arg0: memref<4x512xf32, #tpu.memory_space<vmem>>, %arg1: memref<2x4xf32, #tpu.memory_space<vmem>>, %arg2: memref<2x1xf32, #tpu.memory_space<vmem>>, %arg3: memref<2x512xf32, #tpu.memory_space<vmem>>) attributes {dimension_semantics = [], scalar_prefetch = 0 : i64, scratch_operands = 0 : i64, tpu.core_type = #tpu.core_type<tc>} {
    %c0 = arith.constant 0 : index
    %c0_0 = arith.constant 0 : index
    %0 = vector.load %arg1[%c0, %c0_0] : memref<2x4xf32, #tpu.memory_space<vmem>>, vector<2x4xf32>
    %c0_1 = arith.constant 0 : index
    %c0_2 = arith.constant 0 : index
    %1 = vector.load %arg0[%c0_1, %c0_2] : memref<4x512xf32, #tpu.memory_space<vmem>>, vector<4x512xf32>
    %cst = arith.constant dense<0.000000e+00> : vector<2x512xf32>
    %2 = tpu.matmul %0, %1, %cst {dimension_numbers = #tpu.dot_dimension_numbers<[1], [0], [0], [1], [0, 0, 1, 1], [], []>} : vector<2x4xf32>, vector<4x512xf32>, vector<2x512xf32> -> vector<2x512xf32>
    %c0_3 = arith.constant 0 : index
    %c0_4 = arith.constant 0 : index
    %3 = vector.load %arg2[%c0_3, %c0_4] : memref<2x1xf32, #tpu.memory_space<vmem>>, vector<2x1xf32>
    %4 = vector.broadcast %3 : vector<2x1xf32> to vector<2x512xf32>
    %5 = arith.addf %2, %4 : vector<2x512xf32>
    %6 = vector.extract_strided_slice %5 {offsets = [0, 0], sizes = [1, 512], strides = [1, 1]} : vector<2x512xf32> to vector<1x512xf32>
    %7 = vector.extract_strided_slice %5 {offsets = [1, 0], sizes = [1, 512], strides = [1, 1]} : vector<2x512xf32> to vector<1x512xf32>
    %8 = arith.maximumf %6, %7 : vector<1x512xf32>
    %9 = arith.subf %6, %8 : vector<1x512xf32>
    %10 = math.exp %9 : vector<1x512xf32>
    %11 = arith.subf %7, %8 : vector<1x512xf32>
    %12 = math.exp %11 : vector<1x512xf32>
    %13 = arith.addf %10, %12 : vector<1x512xf32>
    %14 = tpu.reciprocal %13 {approx = true} : vector<1x512xf32> -> vector<1x512xf32>
    %15 = arith.mulf %10, %14 : vector<1x512xf32>
    %16 = arith.mulf %12, %14 : vector<1x512xf32>
    %17 = tpu.concatenate %15, %16 in 0 : vector<1x512xf32>, vector<1x512xf32> -> vector<2x512xf32>
    %c0_5 = arith.constant 0 : index
    %c0_6 = arith.constant 0 : index
    %18 = vector.load %arg3[%c0_5, %c0_6] : memref<2x512xf32, #tpu.memory_space<vmem>>, vector<2x512xf32>
    tpu.vector_store %arg3[%c0_5, %c0_6], %17 {strides = array<i32>} : memref<2x512xf32, #tpu.memory_space<vmem>>, vector<2x512xf32>,
    return
  }
}

module attributes {stable_mosaic.version = 11 : i64} {
  func.func @_roi_gate_cls_kernel(%arg0: memref<2x96x16xf32, #tpu.memory_space<vmem>>, %arg1: memref<2x96x96xf32, #tpu.memory_space<vmem>>, %arg2: memref<2x16x16xf32, #tpu.memory_space<vmem>>, %arg3: memref<3x16xf32, #tpu.memory_space<vmem>>, %arg4: memref<8x64xf32, #tpu.memory_space<vmem>>, %arg5: memref<8x1xf32, #tpu.memory_space<vmem>>, %arg6: memref<8x2xf32, #tpu.memory_space<vmem>>) attributes {dimension_semantics = [], scalar_prefetch = 0 : i64, scratch_operands = 0 : i64, tpu.core_type = #tpu.core_type<tc>} {
    %c0 = arith.constant 0 : index
    %c0_0 = arith.constant 0 : index
    %0 = vector.load %arg3[%c0, %c0_0] : memref<3x16xf32, #tpu.memory_space<vmem>>, vector<3x16xf32>
    %c0_1 = arith.constant 0 : index
    %c0_2 = arith.constant 0 : index
    %1 = vector.load %arg4[%c0_1, %c0_2] : memref<8x64xf32, #tpu.memory_space<vmem>>, vector<8x64xf32>
    %c0_3 = arith.constant 0 : index
    %c0_4 = arith.constant 0 : index
    %2 = vector.load %arg5[%c0_3, %c0_4] : memref<8x1xf32, #tpu.memory_space<vmem>>, vector<8x1xf32>
    %c0_5 = arith.constant 0 : index
    %c0_6 = arith.constant 0 : index
    %c0_7 = arith.constant 0 : index
    %3 = vector.load %arg0[%c0_5, %c0_6, %c0_7] : memref<2x96x16xf32, #tpu.memory_space<vmem>>, vector<1x96x16xf32>
    %4 = vector.shape_cast %3 : vector<1x96x16xf32> to vector<96x16xf32>
    %c0_8 = arith.constant 0 : index
    %c0_9 = arith.constant 0 : index
    %c0_10 = arith.constant 0 : index
    %5 = vector.load %arg2[%c0_8, %c0_9, %c0_10] : memref<2x16x16xf32, #tpu.memory_space<vmem>>, vector<1x16x16xf32>
    %6 = vector.shape_cast %5 : vector<1x16x16xf32> to vector<16x16xf32>
    %cst = arith.constant dense<0.000000e+00> : vector<96x16xf32>
    %7 = tpu.matmul %4, %6, %cst {dimension_numbers = #tpu.dot_dimension_numbers<[1], [0], [0], [1], [0, 0, 1, 1], [], []>} : vector<96x16xf32>, vector<16x16xf32>, vector<96x16xf32> -> vector<96x16xf32>
    %c0_11 = arith.constant 0 : index
    %c0_12 = arith.constant 0 : index
    %c0_13 = arith.constant 0 : index
    %8 = vector.load %arg1[%c0_11, %c0_12, %c0_13] : memref<2x96x96xf32, #tpu.memory_space<vmem>>, vector<1x96x96xf32>
    %9 = vector.shape_cast %8 : vector<1x96x96xf32> to vector<96x96xf32>
    %cst_14 = arith.constant dense<0.000000e+00> : vector<96x16xf32>
    %10 = tpu.matmul %9, %7, %cst_14 {dimension_numbers = #tpu.dot_dimension_numbers<[1], [0], [0], [1], [0, 0, 1, 1], [], []>} : vector<96x96xf32>, vector<96x16xf32>, vector<96x16xf32> -> vector<96x16xf32>
    %11 = vector.extract_strided_slice %10 {offsets = [0, 0], sizes = [16, 16], strides = [1, 1]} : vector<96x16xf32> to vector<16x16xf32>
    %12 = vector.extract_strided_slice %10 {offsets = [16, 0], sizes = [16, 16], strides = [1, 1]} : vector<96x16xf32> to vector<16x16xf32>
    %13 = vector.extract_strided_slice %10 {offsets = [32, 0], sizes = [64, 16], strides = [1, 1]} : vector<96x16xf32> to vector<64x16xf32>
    %14 = arith.cmpf ogt, %12, %11 : vector<16x16xf32>
    %15 = arith.extui %14 : vector<16x16xi1> to vector<16x16xi32>
    %16 = arith.sitofp %15 : vector<16x16xi32> to vector<16x16xf32>
    %cst_15 = arith.constant dense<0.000000e+00> : vector<3x16xf32>
    %17 = tpu.matmul %0, %16, %cst_15 {dimension_numbers = #tpu.dot_dimension_numbers<[1], [0], [0], [1], [0, 0, 1, 1], [], []>} : vector<3x16xf32>, vector<16x16xf32>, vector<3x16xf32> -> vector<3x16xf32>
    %cst_16 = arith.constant dense<0.000000e+00> : vector<3xf32>
    %18 = vector.multi_reduction <add>, %17, %cst_16 [1] : vector<3x16xf32> to vector<3xf32>
    %19 = vector.shape_cast %18 : vector<3xf32> to vector<3x1xf32>
    %20 = vector.extract_strided_slice %19 {offsets = [0, 0], sizes = [1, 1], strides = [1, 1]} : vector<3x1xf32> to vector<1x1xf32>
    %21 = vector.extract_strided_slice %19 {offsets = [1, 0], sizes = [1, 1], strides = [1, 1]} : vector<3x1xf32> to vector<1x1xf32>
    %22 = vector.extract_strided_slice %19 {offsets = [2, 0], sizes = [1, 1], strides = [1, 1]} : vector<3x1xf32> to vector<1x1xf32>
    %cst_17 = arith.constant 3.000000e-01 : f32
    %23 = vector.broadcast %cst_17 : f32 to vector<1x1xf32>
    %24 = arith.cmpf oge, %20, %23 : vector<1x1xf32>
    %cst_18 = arith.constant 6.000000e-01 : f32
    %25 = vector.broadcast %cst_18 : f32 to vector<1x1xf32>
    %26 = arith.cmpf ole, %20, %25 : vector<1x1xf32>
    %27 = arith.andi %24, %26 : vector<1x1xi1>
    %cst_19 = arith.constant 6.000000e-01 : f32
    %28 = vector.broadcast %cst_19 : f32 to vector<1x1xf32>
    %29 = arith.cmpf oge, %21, %28 : vector<1x1xf32>
    %30 = arith.andi %27, %29 : vector<1x1xi1>
    %cst_20 = arith.constant 0.899999976 : f32
    %31 = vector.broadcast %cst_20 : f32 to vector<1x1xf32>
    %32 = arith.cmpf ole, %21, %31 : vector<1x1xf32>
    %33 = arith.andi %30, %32 : vector<1x1xi1>
    %cst_21 = arith.constant 4.000000e-01 : f32
    %34 = vector.broadcast %cst_21 : f32 to vector<1x1xf32>
    %35 = arith.cmpf oge, %22, %34 : vector<1x1xf32>
    %36 = arith.andi %33, %35 : vector<1x1xi1>
    %cst_22 = arith.constant 6.000000e-01 : f32
    %37 = vector.broadcast %cst_22 : f32 to vector<1x1xf32>
    %38 = arith.cmpf ole, %22, %37 : vector<1x1xf32>
    %39 = arith.andi %36, %38 : vector<1x1xi1>
    %40 = arith.extui %39 : vector<1x1xi1> to vector<1x1xi32>
    %41 = arith.sitofp %40 : vector<1x1xi32> to vector<1x1xf32>
    %cst_23 = arith.constant 2.000000e-01 : f32
    %42 = vector.broadcast %cst_23 : f32 to vector<16x16xf32>
    %43 = arith.cmpf oge, %12, %42 : vector<16x16xf32>
    %cst_24 = arith.constant 8.000000e-01 : f32
    %44 = vector.broadcast %cst_24 : f32 to vector<16x16xf32>
    %45 = arith.addf %44, %12 : vector<16x16xf32>
    %cst_25 = arith.constant 1.000000e+00 : f32
    %46 = vector.broadcast %cst_25 : f32 to vector<16x16xf32>
    %47 = arith.select %43, %46, %45 : vector<16x16xi1>, vector<16x16xf32>
    %cst_26 = arith.constant 0.000000e+00 : f32
    %cst_27 = arith.constant 1.000000e+00 : f32
    %48 = vector.broadcast %cst_26 : f32 to vector<16x16xf32>
    %49 = arith.maximumf %48, %47 : vector<16x16xf32>
    %50 = vector.broadcast %cst_27 : f32 to vector<16x16xf32>
    %51 = arith.minimumf %50, %49 : vector<16x16xf32>
    %52 = vector.broadcast %41 : vector<1x1xf32> to vector<16x16xf32>
    %53 = arith.mulf %52, %51 : vector<16x16xf32>
    %cst_28 = arith.constant 1.000000e+00 : f32
    %54 = vector.broadcast %cst_28 : f32 to vector<1x1xf32>
    %55 = arith.subf %54, %41 : vector<1x1xf32>
    %56 = vector.broadcast %55 : vector<1x1xf32> to vector<16x16xf32>
    %57 = arith.addf %53, %56 : vector<16x16xf32>
    %58 = tpu.concatenate %57, %57, %57, %57 in 0 : vector<16x16xf32>, vector<16x16xf32>, vector<16x16xf32>, vector<16x16xf32> -> vector<64x16xf32>
    %59 = arith.mulf %58, %13 : vector<64x16xf32>
    %cst_29 = arith.constant dense<0.000000e+00> : vector<8x16xf32>
    %60 = tpu.matmul %1, %59, %cst_29 {dimension_numbers = #tpu.dot_dimension_numbers<[1], [0], [0], [1], [0, 0, 1, 1], [], []>} : vector<8x64xf32>, vector<64x16xf32>, vector<8x16xf32> -> vector<8x16xf32>
    %cst_30 = arith.constant dense<0.000000e+00> : vector<8xf32>
    %61 = vector.multi_reduction <add>, %60, %cst_30 [1] : vector<8x16xf32> to vector<8xf32>
    %62 = vector.shape_cast %61 : vector<8xf32> to vector<8x1xf32>
    %63 = arith.addf %62, %2 : vector<8x1xf32>
    %c1 = arith.constant 1 : index
    %c0_31 = arith.constant 0 : index
    %c0_32 = arith.constant 0 : index
    %64 = vector.load %arg0[%c1, %c0_31, %c0_32] : memref<2x96x16xf32, #tpu.memory_space<vmem>>, vector<1x96x16xf32>
    %65 = vector.shape_cast %64 : vector<1x96x16xf32> to vector<96x16xf32>
    %c1_33 = arith.constant 1 : index
    %c0_34 = arith.constant 0 : index
    %c0_35 = arith.constant 0 : index
    %66 = vector.load %arg2[%c1_33, %c0_34, %c0_35] : memref<2x16x16xf32, #tpu.memory_space<vmem>>, vector<1x16x16xf32>
    %67 = vector.shape_cast %66 : vector<1x16x16xf32> to vector<16x16xf32>
    %cst_36 = arith.constant dense<0.000000e+00> : vector<96x16xf32>
    %68 = tpu.matmul %65, %67, %cst_36 {dimension_numbers = #tpu.dot_dimension_numbers<[1], [0], [0], [1], [0, 0, 1, 1], [], []>} : vector<96x16xf32>, vector<16x16xf32>, vector<96x16xf32> -> vector<96x16xf32>
    %c1_37 = arith.constant 1 : index
    %c0_38 = arith.constant 0 : index
    %c0_39 = arith.constant 0 : index
    %69 = vector.load %arg1[%c1_37, %c0_38, %c0_39] : memref<2x96x96xf32, #tpu.memory_space<vmem>>, vector<1x96x96xf32>
    %70 = vector.shape_cast %69 : vector<1x96x96xf32> to vector<96x96xf32>
    %cst_40 = arith.constant dense<0.000000e+00> : vector<96x16xf32>
    %71 = tpu.matmul %70, %68, %cst_40 {dimension_numbers = #tpu.dot_dimension_numbers<[1], [0], [0], [1], [0, 0, 1, 1], [], []>} : vector<96x96xf32>, vector<96x16xf32>, vector<96x16xf32> -> vector<96x16xf32>
    %72 = vector.extract_strided_slice %71 {offsets = [0, 0], sizes = [16, 16], strides = [1, 1]} : vector<96x16xf32> to vector<16x16xf32>
    %73 = vector.extract_strided_slice %71 {offsets = [16, 0], sizes = [16, 16], strides = [1, 1]} : vector<96x16xf32> to vector<16x16xf32>
    %74 = vector.extract_strided_slice %71 {offsets = [32, 0], sizes = [64, 16], strides = [1, 1]} : vector<96x16xf32> to vector<64x16xf32>
    %75 = arith.cmpf ogt, %73, %72 : vector<16x16xf32>
    %76 = arith.extui %75 : vector<16x16xi1> to vector<16x16xi32>
    %77 = arith.sitofp %76 : vector<16x16xi32> to vector<16x16xf32>
    %cst_41 = arith.constant dense<0.000000e+00> : vector<3x16xf32>
    %78 = tpu.matmul %0, %77, %cst_41 {dimension_numbers = #tpu.dot_dimension_numbers<[1], [0], [0], [1], [0, 0, 1, 1], [], []>} : vector<3x16xf32>, vector<16x16xf32>, vector<3x16xf32> -> vector<3x16xf32>
    %cst_42 = arith.constant dense<0.000000e+00> : vector<3xf32>
    %79 = vector.multi_reduction <add>, %78, %cst_42 [1] : vector<3x16xf32> to vector<3xf32>
    %80 = vector.shape_cast %79 : vector<3xf32> to vector<3x1xf32>
    %81 = vector.extract_strided_slice %80 {offsets = [0, 0], sizes = [1, 1], strides = [1, 1]} : vector<3x1xf32> to vector<1x1xf32>
    %82 = vector.extract_strided_slice %80 {offsets = [1, 0], sizes = [1, 1], strides = [1, 1]} : vector<3x1xf32> to vector<1x1xf32>
    %83 = vector.extract_strided_slice %80 {offsets = [2, 0], sizes = [1, 1], strides = [1, 1]} : vector<3x1xf32> to vector<1x1xf32>
    %cst_43 = arith.constant 3.000000e-01 : f32
    %84 = vector.broadcast %cst_43 : f32 to vector<1x1xf32>
    %85 = arith.cmpf oge, %81, %84 : vector<1x1xf32>
    %cst_44 = arith.constant 6.000000e-01 : f32
    %86 = vector.broadcast %cst_44 : f32 to vector<1x1xf32>
    %87 = arith.cmpf ole, %81, %86 : vector<1x1xf32>
    %88 = arith.andi %85, %87 : vector<1x1xi1>
    %cst_45 = arith.constant 6.000000e-01 : f32
    %89 = vector.broadcast %cst_45 : f32 to vector<1x1xf32>
    %90 = arith.cmpf oge, %82, %89 : vector<1x1xf32>
    %91 = arith.andi %88, %90 : vector<1x1xi1>
    %cst_46 = arith.constant 0.899999976 : f32
    %92 = vector.broadcast %cst_46 : f32 to vector<1x1xf32>
    %93 = arith.cmpf ole, %82, %92 : vector<1x1xf32>
    %94 = arith.andi %91, %93 : vector<1x1xi1>
    %cst_47 = arith.constant 4.000000e-01 : f32
    %95 = vector.broadcast %cst_47 : f32 to vector<1x1xf32>
    %96 = arith.cmpf oge, %83, %95 : vector<1x1xf32>
    %97 = arith.andi %94, %96 : vector<1x1xi1>
    %cst_48 = arith.constant 6.000000e-01 : f32
    %98 = vector.broadcast %cst_48 : f32 to vector<1x1xf32>
    %99 = arith.cmpf ole, %83, %98 : vector<1x1xf32>
    %100 = arith.andi %97, %99 : vector<1x1xi1>
    %101 = arith.extui %100 : vector<1x1xi1> to vector<1x1xi32>
    %102 = arith.sitofp %101 : vector<1x1xi32> to vector<1x1xf32>
    %cst_49 = arith.constant 2.000000e-01 : f32
    %103 = vector.broadcast %cst_49 : f32 to vector<16x16xf32>
    %104 = arith.cmpf oge, %73, %103 : vector<16x16xf32>
    %cst_50 = arith.constant 8.000000e-01 : f32
    %105 = vector.broadcast %cst_50 : f32 to vector<16x16xf32>
    %106 = arith.addf %105, %73 : vector<16x16xf32>
    %cst_51 = arith.constant 1.000000e+00 : f32
    %107 = vector.broadcast %cst_51 : f32 to vector<16x16xf32>
    %108 = arith.select %104, %107, %106 : vector<16x16xi1>, vector<16x16xf32>
    %cst_52 = arith.constant 0.000000e+00 : f32
    %cst_53 = arith.constant 1.000000e+00 : f32
    %109 = vector.broadcast %cst_52 : f32 to vector<16x16xf32>
    %110 = arith.maximumf %109, %108 : vector<16x16xf32>
    %111 = vector.broadcast %cst_53 : f32 to vector<16x16xf32>
    %112 = arith.minimumf %111, %110 : vector<16x16xf32>
    %113 = vector.broadcast %102 : vector<1x1xf32> to vector<16x16xf32>
    %114 = arith.mulf %113, %112 : vector<16x16xf32>
    %cst_54 = arith.constant 1.000000e+00 : f32
    %115 = vector.broadcast %cst_54 : f32 to vector<1x1xf32>
    %116 = arith.subf %115, %102 : vector<1x1xf32>
    %117 = vector.broadcast %116 : vector<1x1xf32> to vector<16x16xf32>
    %118 = arith.addf %114, %117 : vector<16x16xf32>
    %119 = tpu.concatenate %118, %118, %118, %118 in 0 : vector<16x16xf32>, vector<16x16xf32>, vector<16x16xf32>, vector<16x16xf32> -> vector<64x16xf32>
    %120 = arith.mulf %119, %74 : vector<64x16xf32>
    %cst_55 = arith.constant dense<0.000000e+00> : vector<8x16xf32>
    %121 = tpu.matmul %1, %120, %cst_55 {dimension_numbers = #tpu.dot_dimension_numbers<[1], [0], [0], [1], [0, 0, 1, 1], [], []>} : vector<8x64xf32>, vector<64x16xf32>, vector<8x16xf32> -> vector<8x16xf32>
    %cst_56 = arith.constant dense<0.000000e+00> : vector<8xf32>
    %122 = vector.multi_reduction <add>, %121, %cst_56 [1] : vector<8x16xf32> to vector<8xf32>
    %123 = vector.shape_cast %122 : vector<8xf32> to vector<8x1xf32>
    %124 = arith.addf %123, %2 : vector<8x1xf32>
    %125 = tpu.concatenate %63, %124 in 1 : vector<8x1xf32>, vector<8x1xf32> -> vector<8x2xf32>
    %c0_57 = arith.constant 0 : index
    %c0_58 = arith.constant 0 : index
    %126 = vector.load %arg6[%c0_57, %c0_58] : memref<8x2xf32, #tpu.memory_space<vmem>>, vector<8x2xf32>
    tpu.vector_store %arg6[%c0_57, %c0_58], %125 {strides = array<i32>} : memref<8x2xf32, #tpu.memory_space<vmem>>, vector<8x2xf32>,
    return
  }
}

</mosaic_0001>

<llo_original>
// kernel: rbsg_forward.2
$region0: #{rbsg_forward.2}
  #allocation0 [shape = 'u32[]', space=smem, size = 0x4, offset = 0x4, fixed_abs, tag = 'smem constant byte address 0x4 - core index']
  #allocation1 [shape = 'u32[144,128]{1,0:T(1,128)}', space=vmem, size = 0x12000, scoped, tag = 'internal scratch']
  %s0 = inlined_call_operand.vmem [shape: f32[4,512], index: 0, kind: input, shape index: {}]
  %s1 = inlined_call_operand.vmem [shape: f32[2,4], index: 1, kind: input, shape index: {}]
  %s2 = inlined_call_operand.vmem [shape: f32[2,1], index: 2, kind: input, shape index: {}]
  %s3 = inlined_call_operand.vmem [shape: f32[2,512], index: 3, kind: output, shape index: {}]
  %s4 = sld [smem:[#allocation0]]
  $region22: #{rbsg_forward.2} parent=0
    _
  %s6 = ssub.s32 1, %s4
  %s7 = scalar_select 0, %s6, %s4
  // Predicated region
  $region2: #{rbsg_forward.2} parent=0 // pred_check
    _
  $region3: #{rbsg_forward.2} parent=0 // pred_check_branch
    %9 = sbr.rel (0) target = $region5
  $region4: #{rbsg_forward.2} parent=0 // pred_region
    _
  $region5: #{rbsg_forward.2} parent=0 // pred_fallthru
    _
  // Predicated region
  $region6: #{rbsg_forward.2} parent=0 // pred_check
    _
  $region7: #{rbsg_forward.2} parent=0 // pred_check_branch
    %11 = sbr.rel (0) target = $region9
  $region8: #{rbsg_forward.2} parent=0 // pred_region
    _
  $region9: #{rbsg_forward.2} parent=0 // pred_fallthru
    _
  // Predicated region
  $region10: #{rbsg_forward.2} parent=0 // pred_check
    _
  $region11: #{rbsg_forward.2} parent=0 // pred_check_branch
    %13 = sbr.rel (0) target = $region13
  $region12: #{rbsg_forward.2} parent=0 // pred_region
    _
  $region13: #{rbsg_forward.2} parent=0 // pred_fallthru
    _
  %v14 = vld [vmem:[%s1] sm:$0x3]
  %v15 = vld [vmem:[%s0] sm:$0xff]
  %v16 = vld [vmem:[%s0 + $0x8] sm:$0xff]
  %v17 = vld [vmem:[%s2] sm:$0x3]
  %19 = vset.pattern.permute.xlu0 0
  %20 = vperm.xlu0 %19, %v17
  %v21 = vpop.permute.xlu0 %20
  %v25 = vcombine.high %v15, %v15
  %v26 = vcombine.high %v16, %v16
  %vm27 = vcmask 31744
  %v29 = vsel %vm27, %v14, 0
  %vm31 = vcmask 1043456
  %v32 = vsel %vm31, %v15, 0
  %v34 = vsel %vm31, %v25, 0
  %v36 = vsel %vm31, %v16, 0
  %v38 = vsel %vm31, %v26, 0
  %40 = vmatprep.subr.mxu0 %v34
  %41 = vmatpush1.msra.mxu0 %v32
  %42 = vmatprep.subr.mxu0 0.0
  %43 = vmatpush1.msra.mxu0 0.0
  %44 = vmatprep.subr.mxu0 0.0
  %45 = vmatpush1.msra.mxu0 0.0
  %46 = vmatprep.subr.mxu0 0.0
  %47 = vmatpush1.msra.mxu0 0.0
  %48 = vmatprep.subr.mxu0 0.0
  %49 = vmatpush1.msra.mxu0 0.0
  %50 = vmatprep.subr.mxu0 0.0
  %51 = vmatpush1.msra.mxu0 0.0
  %52 = vmatprep.subr.mxu0 0.0
  %53 = vmatpush1.msra.mxu0 0.0
  %54 = vmatprep.subr.mxu0 0.0
  %55 = vmatpush1.msra.mxu0 0.0
  %56 = vmatprep.subr.mxu0 0.0
  %57 = vmatpush1.msra.mxu0 0.0
  %58 = vmatprep.subr.mxu0 0.0
  %59 = vmatpush1.msra.mxu0 0.0
  %60 = vmatprep.subr.mxu0 0.0
  %61 = vmatpush1.msra.mxu0 0.0
  %62 = vmatprep.subr.mxu0 0.0
  %63 = vmatpush1.msra.mxu0 0.0
  %64 = vmatprep.subr.mxu0 0.0
  %65 = vmatpush1.msra.mxu0 0.0
  %66 = vmatprep.subr.mxu0 0.0
  %67 = vmatpush1.msra.mxu0 0.0
  %68 = vmatprep.subr.mxu0 0.0
  %69 = vmatpush1.msra.mxu0 0.0
  %70 = vmatprep.subr.mxu0 0.0
  %71 = vmatpush1.msra.mxu0 0.0
  %72 = vmatprep.subr.mxu0 0.0
  %73 = vmatpush1.msra.mxu0 0.0
  %74 = vmatprep.subr.mxu0 0.0
  %75 = vmatpush1.msra.mxu0 0.0
  %76 = vmatprep.subr.mxu0 0.0
  %77 = vmatpush1.msra.mxu0 0.0
  %78 = vmatprep.subr.mxu0 0.0
  %79 = vmatpush1.msra.mxu0 0.0
  %80 = vmatprep.subr.mxu0 0.0
  %81 = vmatpush1.msra.mxu0 0.0
  %82 = vmatprep.subr.mxu0 0.0
  %83 = vmatpush1.msra.mxu0 0.0
  %84 = vmatprep.subr.mxu0 0.0
  %85 = vmatpush1.msra.mxu0 0.0
  %86 = vmatprep.subr.mxu0 0.0
  %87 = vmatpush1.msra.mxu0 0.0
  %88 = vmatprep.subr.mxu0 0.0
  %89 = vmatpush1.msra.mxu0 0.0
  %90 = vmatprep.subr.mxu0 0.0
  %91 = vmatpush1.msra.mxu0 0.0
  %92 = vmatprep.subr.mxu0 0.0
  %93 = vmatpush1.msra.mxu0 0.0
  %94 = vmatprep.subr.mxu0 0.0
  %95 = vmatpush1.msra.mxu0 0.0
  %96 = vmatprep.subr.mxu0 0.0
  %97 = vmatpush1.msra.mxu0 0.0
  %98 = vmatprep.subr.mxu0 0.0
  %99 = vmatpush1.msra.mxu0 0.0
  %100 = vmatprep.subr.mxu0 0.0
  %101 = vmatpush1.msra.mxu0 0.0
  %102 = vmatprep.subr.mxu0 0.0
  %103 = vmatpush1.msra.mxu0 0.0
  %104 = vmatprep.mubr.f32.mxu0 0.0
  %105 = vmatmul.mubr.f32.gmra.mrb[0].mxu0 %v29
  %v106 = vpop.f32.mrb[0].mxu0
  %v107 = vadd.f32 %v21, %v106
  %v108 = vpop.f32.mrb[0].mxu0
  %v109 = vadd.f32 %v21, %v108
  %110 = vdwg.mxu0
  %111 = vmatprep.subr.mxu0 %v38
  %112 = vmatpush1.msra.mxu0 %v36
  %113 = vmatprep.subr.mxu0 0.0
  %114 = vmatpush1.msra.mxu0 0.0
  %115 = vmatprep.subr.mxu0 0.0
  %116 = vmatpush1.msra.mxu0 0.0
  %117 = vmatprep.subr.mxu0 0.0
  %118 = vmatpush1.msra.mxu0 0.0
  %119 = vmatprep.subr.mxu0 0.0
  %120 = vmatpush1.msra.mxu0 0.0
  %121 = vmatprep.subr.mxu0 0.0
  %122 = vmatpush1.msra.mxu0 0.0
  %123 = vmatprep.subr.mxu0 0.0
  %124 = vmatpush1.msra.mxu0 0.0
  %125 = vmatprep.subr.mxu0 0.0
  %126 = vmatpush1.msra.mxu0 0.0
  %127 = vmatprep.subr.mxu0 0.0
  %128 = vmatpush1.msra.mxu0 0.0
  %129 = vmatprep.subr.mxu0 0.0
  %130 = vmatpush1.msra.mxu0 0.0
  %131 = vmatprep.subr.mxu0 0.0
  %132 = vmatpush1.msra.mxu0 0.0
  %133 = vmatprep.subr.mxu0 0.0
  %134 = vmatpush1.msra.mxu0 0.0
  %135 = vmatprep.subr.mxu0 0.0
  %136 = vmatpush1.msra.mxu0 0.0
  %137 = vmatprep.subr.mxu0 0.0
  %138 = vmatpush1.msra.mxu0 0.0
  %139 = vmatprep.subr.mxu0 0.0
  %140 = vmatpush1.msra.mxu0 0.0
  %141 = vmatprep.subr.mxu0 0.0
  %142 = vmatpush1.msra.mxu0 0.0
  %143 = vmatprep.subr.mxu0 0.0
  %144 = vmatpush1.msra.mxu0 0.0
  %145 = vmatprep.subr.mxu0 0.0
  %146 = vmatpush1.msra.mxu0 0.0
  %147 = vmatprep.subr.mxu0 0.0
  %148 = vmatpush1.msra.mxu0 0.0
  %149 = vmatprep.subr.mxu0 0.0
  %150 = vmatpush1.msra.mxu0 0.0
  %151 = vmatprep.subr.mxu0 0.0
  %152 = vmatpush1.msra.mxu0 0.0
  %153 = vmatprep.subr.mxu0 0.0
  %154 = vmatpush1.msra.mxu0 0.0
  %155 = vmatprep.subr.mxu0 0.0
  %156 = vmatpush1.msra.mxu0 0.0
  %157 = vmatprep.subr.mxu0 0.0
  %158 = vmatpush1.msra.mxu0 0.0
  %159 = vmatprep.subr.mxu0 0.0
  %160 = vmatpush1.msra.mxu0 0.0
  %161 = vmatprep.subr.mxu0 0.0
  %162 = vmatpush1.msra.mxu0 0.0
  %163 = vmatprep.subr.mxu0 0.0
  %164 = vmatpush1.msra.mxu0 0.0
  %165 = vmatprep.subr.mxu0 0.0
  %166 = vmatpush1.msra.mxu0 0.0
  %167 = vmatprep.subr.mxu0 0.0
  %168 = vmatpush1.msra.mxu0 0.0
  %169 = vmatprep.subr.mxu0 0.0
  %170 = vmatpush1.msra.mxu0 0.0
  %171 = vmatprep.subr.mxu0 0.0
  %172 = vmatpush1.msra.mxu0 0.0
  %173 = vmatprep.subr.mxu0 0.0
  %174 = vmatpush1.msra.mxu0 0.0
  %175 = vmatprep.mubr.f32.mxu0 0.0
  %176 = vmatmul.mubr.f32.gmra.mrb[0].mxu0 %v29
  %v177 = vpop.f32.mrb[0].mxu0
  %v178 = vadd.f32 %v21, %v177
  %v179 = vpop.f32.mrb[0].mxu0
  %v180 = vadd.f32 %v21, %v179
  %181 = vdwg.mxu0
  %v186 = vrot.slane %v107, 1
  %v187 = vrot.slane %v109, 1
  %v188 = vrot.slane %v178, 1
  %v189 = vrot.slane %v180, 1
  %v194 = vmax.f32 %v107, %v186
  %v195 = vmax.f32 %v109, %v187
  %v196 = vmax.f32 %v178, %v188
  %v197 = vmax.f32 %v180, %v189
  %v198 = vsub.f32 %v107, %v194
  %v199 = vsub.f32 %v109, %v195
  %v200 = vsub.f32 %v178, %v196
  %v201 = vsub.f32 %v180, %v197
  %v202 = vmul.f32 %v198, 1.442695
  %v203 = vpow.pop %v202
  %v204 = vmul.f32 %v199, 1.442695
  %v205 = vpow.pop %v204
  %v206 = vmul.f32 %v200, 1.442695
  %v207 = vpow.pop %v206
  %v208 = vmul.f32 %v201, 1.442695
  %v209 = vpow.pop %v208
  %v214 = vrot.slane %v194, 7
  %v215 = vrot.slane %v195, 7
  %v216 = vrot.slane %v196, 7
  %v217 = vrot.slane %v197, 7
  %v222 = vsub.f32 %v107, %v214
  %v223 = vsub.f32 %v109, %v215
  %v224 = vsub.f32 %v178, %v216
  %v225 = vsub.f32 %v180, %v217
  %v226 = vmul.f32 %v222, 1.442695
  %v227 = vpow.pop %v226
  %v228 = vmul.f32 %v223, 1.442695
  %v229 = vpow.pop %v228
  %v230 = vmul.f32 %v224, 1.442695
  %v231 = vpow.pop %v230
  %v232 = vmul.f32 %v225, 1.442695
  %v233 = vpow.pop %v232
  %v238 = vrot.slane %v227, 1
  %v239 = vrot.slane %v229, 1
  %v240 = vrot.slane %v231, 1
  %v241 = vrot.slane %v233, 1
  %v246 = vadd.f32 %v203, %v238
  %v247 = vadd.f32 %v205, %v239
  %v248 = vadd.f32 %v207, %v240
  %v249 = vadd.f32 %v209, %v241
  %v250 = vrcp.pop %v246
  %v251 = vrcp.pop %v247
  %v252 = vrcp.pop %v248
  %v253 = vrcp.pop %v249
  %v254 = vmul.f32 %v203, %v250
  %v255 = vmul.f32 %v205, %v251
  %v256 = vmul.f32 %v207, %v252
  %v257 = vmul.f32 %v209, %v253
  %v262 = vrot.slane %v250, 7
  %v263 = vrot.slane %v251, 7
  %v264 = vrot.slane %v252, 7
  %v265 = vrot.slane %v253, 7
  %v270 = vmul.f32 %v227, %v262
  %v271 = vmul.f32 %v229, %v263
  %v272 = vmul.f32 %v231, %v264
  %v273 = vmul.f32 %v233, %v265
  %vm274 = vcmask 1040384
  %v275 = vsel %vm274, %v254, %v270
  %v276 = vsel %vm274, %v255, %v271
  %v277 = vsel %vm274, %v256, %v272
  %v278 = vsel %vm274, %v257, %v273
  %v283 = vcombine.low %v275, %v276
  %v284 = vcombine.low %v277, %v278
  %v286 = vunpack.c.l.s4 1983009808
  %v287 = vunpack.c.0.s8 %v286
  %v288 = vlaneseq
  %v289 = vshrl.u32 %v288, 7
  %v290 = vsub.s32 %v287, %v289
  %v291 = vrot.slane %v283, %v290
  %v293 = vunpack.c.l.s4 1983009808
  %v294 = vunpack.c.0.s8 %v293
  %v295 = vlaneseq
  %v296 = vshrl.u32 %v295, 7
  %v297 = vsub.s32 %v294, %v296
  %v298 = vrot.slane %v284, %v297
  %v299 = vcombine.low %v291, %v298
  %301 = vst [vmem:[%s3] sm:$0xff] %v299
  // Predicated region
  $region14: #{rbsg_forward.2} parent=0 // pred_check
    _
  $region15: #{rbsg_forward.2} parent=0 // pred_check_branch
    %303 = sbr.rel (0) target = $region17
  $region16: #{rbsg_forward.2} parent=0 // pred_region
    _
  $region17: #{rbsg_forward.2} parent=0 // pred_fallthru
    _
  // Predicated region
  $region18: #{rbsg_forward.2} parent=0 // pred_check
    _
  $region19: #{rbsg_forward.2} parent=0 // pred_check_branch
    %305 = sbr.rel (0) target = $region21
  $region20: #{rbsg_forward.2} parent=0 // pred_region
    _
  $region21: #{rbsg_forward.2} parent=0 // pred_fallthru
    _

// kernel: rbsg_forward.3
$region0: #{rbsg_forward.3}
  #allocation0 [shape = 'u32[]', space=smem, size = 0x4, offset = 0x4, fixed_abs, tag = 'smem constant byte address 0x4 - core index']
  #allocation1 [shape = 'u32[144,128]{1,0:T(1,128)}', space=vmem, size = 0x12000, scoped, tag = 'internal scratch']
  %s0 = inlined_call_operand.vmem [shape: f32[2,96,16], index: 0, kind: input, shape index: {}]
  %s1 = inlined_call_operand.vmem [shape: f32[2,96,96], index: 1, kind: input, shape index: {}]
  %s2 = inlined_call_operand.vmem [shape: f32[2,16,16], index: 2, kind: input, shape index: {}]
  %s3 = inlined_call_operand.vmem [shape: f32[3,16], index: 3, kind: input, shape index: {}]
  %s4 = inlined_call_operand.vmem [shape: f32[8,64], index: 4, kind: input, shape index: {}]
  %s5 = inlined_call_operand.vmem [shape: f32[8,1], index: 5, kind: input, shape index: {}]
  %s6 = inlined_call_operand.vmem [shape: f32[8,2], index: 6, kind: output, shape index: {}]
  %s7 = sld [smem:[#allocation0]]
  $region34: #{rbsg_forward.3} parent=0
    _
  %s9 = ssub.s32 1, %s7
  %s10 = scalar_select 0, %s9, %s7
  // Predicated region
  $region2: #{rbsg_forward.3} parent=0 // pred_check
    _
  $region3: #{rbsg_forward.3} parent=0 // pred_check_branch
    %12 = sbr.rel (0) target = $region5
  $region4: #{rbsg_forward.3} parent=0 // pred_region
    _
  $region5: #{rbsg_forward.3} parent=0 // pred_fallthru
    _
  // Predicated region
  $region6: #{rbsg_forward.3} parent=0 // pred_check
    _
  $region7: #{rbsg_forward.3} parent=0 // pred_check_branch
    %14 = sbr.rel (0) target = $region9
  $region8: #{rbsg_forward.3} parent=0 // pred_region
    _
  $region9: #{rbsg_forward.3} parent=0 // pred_fallthru
    _
  // Predicated region
  $region10: #{rbsg_forward.3} parent=0 // pred_check
    _
  $region11: #{rbsg_forward.3} parent=0 // pred_check_branch
    %16 = sbr.rel (0) target = $region13
  $region12: #{rbsg_forward.3} parent=0 // pred_region
    _
  $region13: #{rbsg_forward.3} parent=0 // pred_fallthru
    _
  // Predicated region
  $region14: #{rbsg_forward.3} parent=0 // pred_check
    _
  $region15: #{rbsg_forward.3} parent=0 // pred_check_branch
    %18 = sbr.rel (0) target = $region17
  $region16: #{rbsg_forward.3} parent=0 // pred_region
    _
  $region17: #{rbsg_forward.3} parent=0 // pred_fallthru
    _
  // Predicated region
  $region18: #{rbsg_forward.3} parent=0 // pred_check
    _
  $region19: #{rbsg_forward.3} parent=0 // pred_check_branch
    %20 = sbr.rel (0) target = $region21
  $region20: #{rbsg_forward.3} parent=0 // pred_region
    _
  $region21: #{rbsg_forward.3} parent=0 // pred_fallthru
    _
  // Predicated region
  $region22: #{rbsg_forward.3} parent=0 // pred_check
    _
  $region23: #{rbsg_forward.3} parent=0 // pred_check_branch
    %22 = sbr.rel (0) target = $region25
  $region24: #{rbsg_forward.3} parent=0 // pred_region
    _
  $region25: #{rbsg_forward.3} parent=0 // pred_fallthru
    _
  %v23 = vld [vmem:[%s3] sm:$0x7]
  %v24 = vld [vmem:[%s4] sm:$0xff]
  %v25 = vld [vmem:[%s5] sm:$0xff]
  %v26 = vld [vmem:[%s0] sm:$0xff]
  %v27 = vld [vmem:[%s0 + $0x8] sm:$0xff]
  %v28 = vld [vmem:[%s0 + $0x10] sm:$0xff]
  %v29 = vld [vmem:[%s0 + $0x18] sm:$0xff]
  %v30 = vld [vmem:[%s0 + $0x20] sm:$0xff]
  %v31 = vld [vmem:[%s0 + $0x28] sm:$0xff]
  %v32 = vld [vmem:[%s0 + $0x30] sm:$0xff]
  %v33 = vld [vmem:[%s0 + $0x38] sm:$0xff]
  %v34 = vld [vmem:[%s0 + $0x40] sm:$0xff]
  %v35 = vld [vmem:[%s0 + $0x48] sm:$0xff]
  %v36 = vld [vmem:[%s0 + $0x50] sm:$0xff]
  %v37 = vld [vmem:[%s0 + $0x58] sm:$0xff]
  %v38 = vld [vmem:[%s2] sm:$0xff]
  %v39 = vld [vmem:[%s2 + $0x8] sm:$0xff]
  %vm40 = vcmask 130048
  %v42 = vsel %vm40, %v26, 0
  %v45 = vsel %vm40, %v27, 0
  %v48 = vsel %vm40, %v28, 0
  %v51 = vsel %vm40, %v29, 0
  %v54 = vsel %vm40, %v30, 0
  %v57 = vsel %vm40, %v31, 0
  %v60 = vsel %vm40, %v32, 0
  %v63 = vsel %vm40, %v33, 0
  %v66 = vsel %vm40, %v34, 0
  %v69 = vsel %vm40, %v35, 0
  %v72 = vsel %vm40, %v36, 0
  %v75 = vsel %vm40, %v37, 0
  %77 = vmatprep.subr.mxu0 0.0
  %78 = vmatpush1.msra.mxu0 %v38
  %79 = vmatprep.subr.mxu0 0.0
  %80 = vmatpush1.msra.mxu0 %v39
  %81 = vmatprep.subr.mxu0 0.0
  %82 = vmatpush1.msra.mxu0 0.0
  %83 = vmatprep.subr.mxu0 0.0
  %84 = vmatpush1.msra.mxu0 0.0
  %85 = vmatprep.subr.mxu0 0.0
  %86 = vmatpush1.msra.mxu0 0.0
  %87 = vmatprep.subr.mxu0 0.0
  %88 = vmatpush1.msra.mxu0 0.0
  %89 = vmatprep.subr.mxu0 0.0
  %90 = vmatpush1.msra.mxu0 0.0
  %91 = vmatprep.subr.mxu0 0.0
  %92 = vmatpush1.msra.mxu0 0.0
  %93 = vmatprep.subr.mxu0 0.0
  %94 = vmatpush1.msra.mxu0 0.0
  %95 = vmatprep.subr.mxu0 0.0
  %96 = vmatpush1.msra.mxu0 0.0
  %97 = vmatprep.subr.mxu0 0.0
  %98 = vmatpush1.msra.mxu0 0.0
  %99 = vmatprep.subr.mxu0 0.0
  %100 = vmatpush1.msra.mxu0 0.0
  %101 = vmatprep.subr.mxu0 0.0
  %102 = vmatpush1.msra.mxu0 0.0
  %103 = vmatprep.subr.mxu0 0.0
  %104 = vmatpush1.msra.mxu0 0.0
  %105 = vmatprep.subr.mxu0 0.0
  %106 = vmatpush1.msra.mxu0 0.0
  %107 = vmatprep.subr.mxu0 0.0
  %108 = vmatpush1.msra.mxu0 0.0
  %109 = vmatprep.subr.mxu0 0.0
  %110 = vmatpush1.msra.mxu0 0.0
  %111 = vmatprep.subr.mxu0 0.0
  %112 = vmatpush1.msra.mxu0 0.0
  %113 = vmatprep.subr.mxu0 0.0
  %114 = vmatpush1.msra.mxu0 0.0
  %115 = vmatprep.subr.mxu0 0.0
  %116 = vmatpush1.msra.mxu0 0.0
  %117 = vmatprep.subr.mxu0 0.0
  %118 = vmatpush1.msra.mxu0 0.0
  %119 = vmatprep.subr.mxu0 0.0
  %120 = vmatpush1.msra.mxu0 0.0
  %121 = vmatprep.subr.mxu0 0.0
  %122 = vmatpush1.msra.mxu0 0.0
  %123 = vmatprep.subr.mxu0 0.0
  %124 = vmatpush1.msra.mxu0 0.0
  %125 = vmatprep.subr.mxu0 0.0
  %126 = vmatpush1.msra.mxu0 0.0
  %127 = vmatprep.subr.mxu0 0.0
  %128 = vmatpush1.msra.mxu0 0.0
  %129 = vmatprep.subr.mxu0 0.0
  %130 = vmatpush1.msra.mxu0 0.0
  %131 = vmatprep.subr.mxu0 0.0
  %132 = vmatpush1.msra.mxu0 0.0
  %133 = vmatprep.subr.mxu0 0.0
  %134 = vmatpush1.msra.mxu0 0.0
  %135 = vmatprep.subr.mxu0 0.0
  %136 = vmatpush1.msra.mxu0 0.0
  %137 = vmatprep.subr.mxu0 0.0
  %138 = vmatpush1.msra.mxu0 0.0
  %139 = vmatprep.subr.mxu0 0.0
  %140 = vmatpush1.msra.mxu0 0.0
  %141 = vmatprep.mubr.f32.mxu0 0.0
  %142 = vmatmul.mubr.f32.gmra.mrb[0].mxu0 %v42
  %v143 = vpop.f32.mrb[0].mxu0
  %v144 = vadd.f32 0.0, %v143
  %v145 = vpop.f32.mrb[0].mxu0
  %146 = vmatprep.mubr.f32.mxu0 0.0
  %147 = vmatmul.mubr.f32.gmra.mrb[0].mxu0 %v45
  %v148 = vpop.f32.mrb[0].mxu0
  %v149 = vadd.f32 0.0, %v148
  %v150 = vpop.f32.mrb[0].mxu0
  %151 = vmatprep.mubr.f32.mxu0 0.0
  %152 = vmatmul.mubr.f32.gmra.mrb[0].mxu0 %v48
  %v153 = vpop.f32.mrb[0].mxu0
  %v154 = vadd.f32 0.0, %v153
  %v155 = vpop.f32.mrb[0].mxu0
  %156 = vmatprep.mubr.f32.mxu0 0.0
  %157 = vmatmul.mubr.f32.gmra.mrb[0].mxu0 %v51
  %v158 = vpop.f32.mrb[0].mxu0
  %v159 = vadd.f32 0.0, %v158
  %v160 = vpop.f32.mrb[0].mxu0
  %161 = vmatprep.mubr.f32.mxu0 0.0
  %162 = vmatmul.mubr.f32.gmra.mrb[0].mxu0 %v54
  %v163 = vpop.f32.mrb[0].mxu0
  %v164 = vadd.f32 0.0, %v163
  %v165 = vpop.f32.mrb[0].mxu0
  %166 = vmatprep.mubr.f32.mxu0 0.0
  %167 = vmatmul.mubr.f32.gmra.mrb[0].mxu0 %v57
  %v168 = vpop.f32.mrb[0].mxu0
  %v169 = vadd.f32 0.0, %v168
  %v170 = vpop.f32.mrb[0].mxu0
  %171 = vmatprep.mubr.f32.mxu0 0.0
  %172 = vmatmul.mubr.f32.gmra.mrb[0].mxu0 %v60
  %v173 = vpop.f32.mrb[0].mxu0
  %v174 = vadd.f32 0.0, %v173
  %v175 = vpop.f32.mrb[0].mxu0
  %176 = vmatprep.mubr.f32.mxu0 0.0
  %177 = vmatmul.mubr.f32.gmra.mrb[0].mxu0 %v63
  %v178 = vpop.f32.mrb[0].mxu0
  %v179 = vadd.f32 0.0, %v178
  %v180 = vpop.f32.mrb[0].mxu0
  %181 = vmatprep.mubr.f32.mxu0 0.0
  %182 = vmatmul.mubr.f32.gmra.mrb[0].mxu0 %v66
  %v183 = vpop.f32.mrb[0].mxu0
  %v184 = vadd.f32 0.0, %v183
  %v185 = vpop.f32.mrb[0].mxu0
  %186 = vmatprep.mubr.f32.mxu0 0.0
  %187 = vmatmul.mubr.f32.gmra.mrb[0].mxu0 %v69
  %v188 = vpop.f32.mrb[0].mxu0
  %v189 = vadd.f32 0.0, %v188
  %v190 = vpop.f32.mrb[0].mxu0
  %191 = vmatprep.mubr.f32.mxu0 0.0
  %192 = vmatmul.mubr.f32.gmra.mrb[0].mxu0 %v72
  %v193 = vpop.f32.mrb[0].mxu0
  %v194 = vadd.f32 0.0, %v193
  %v195 = vpop.f32.mrb[0].mxu0
  %196 = vmatprep.mubr.f32.mxu0 0.0
  %197 = vmatmul.mubr.f32.gmra.mrb[0].mxu0 %v75
  %v198 = vpop.f32.mrb[0].mxu0
  %v199 = vadd.f32 0.0, %v198
  %v200 = vpop.f32.mrb[0].mxu0
  %201 = vdwg.mxu0
  %v202 = vld [vmem:[%s1] sm:$0xff]
  %v203 = vld [vmem:[%s1 + $0x8] sm:$0xff]
  %v204 = vld [vmem:[%s1 + $0x10] sm:$0xff]
  %v205 = vld [vmem:[%s1 + $0x18] sm:$0xff]
  %v206 = vld [vmem:[%s1 + $0x20] sm:$0xff]
  %v207 = vld [vmem:[%s1 + $0x28] sm:$0xff]
  %v208 = vld [vmem:[%s1 + $0x30] sm:$0xff]
  %v209 = vld [vmem:[%s1 + $0x38] sm:$0xff]
  %v210 = vld [vmem:[%s1 + $0x40] sm:$0xff]
  %v211 = vld [vmem:[%s1 + $0x48] sm:$0xff]
  %v212 = vld [vmem:[%s1 + $0x50] sm:$0xff]
  %v213 = vld [vmem:[%s1 + $0x58] sm:$0xff]
  %vm214 = vcmask 785408
  %v216 = vsel %vm214, %v202, 0
  %v219 = vsel %vm214, %v203, 0
  %v222 = vsel %vm214, %v204, 0
  %v225 = vsel %vm214, %v205, 0
  %v228 = vsel %vm214, %v206, 0
  %v231 = vsel %vm214, %v207, 0
  %v234 = vsel %vm214, %v208, 0
  %v237 = vsel %vm214, %v209, 0
  %v240 = vsel %vm214, %v210, 0
  %v243 = vsel %vm214, %v211, 0
  %v246 = vsel %vm214, %v212, 0
  %v249 = vsel %vm214, %v213, 0
  %251 = vmatprep.subr.mxu0 0.0
  %252 = vmatpush1.msra.mxu0 %v144
  %253 = vmatprep.subr.mxu0 0.0
  %254 = vmatpush1.msra.mxu0 %v149
  %255 = vmatprep.subr.mxu0 0.0
  %256 = vmatpush1.msra.mxu0 %v154
  %257 = vmatprep.subr.mxu0 0.0
  %258 = vmatpush1.msra.mxu0 %v159
  %259 = vmatprep.subr.mxu0 0.0
  %260 = vmatpush1.msra.mxu0 %v164
  %261 = vmatprep.subr.mxu0 0.0
  %262 = vmatpush1.msra.mxu0 %v169
  %263 = vmatprep.subr.mxu0 0.0
  %264 = vmatpush1.msra.mxu0 %v174
  %265 = vmatprep.subr.mxu0 0.0
  %266 = vmatpush1.msra.mxu0 %v179
  %267 = vmatprep.subr.mxu0 0.0
  %268 = vmatpush1.msra.mxu0 %v184
  %269 = vmatprep.subr.mxu0 0.0
  %270 = vmatpush1.msra.mxu0 %v189
  %271 = vmatprep.subr.mxu0 0.0
  %272 = vmatpush1.msra.mxu0 %v194
  %273 = vmatprep.subr.mxu0 0.0
  %274 = vmatpush1.msra.mxu0 %v199
  %275 = vmatprep.subr.mxu0 0.0
  %276 = vmatpush1.msra.mxu0 0.0
  %277 = vmatprep.subr.mxu0 0.0
  %278 = vmatpush1.msra.mxu0 0.0
  %279 = vmatprep.subr.mxu0 0.0
  %280 = vmatpush1.msra.mxu0 0.0
  %281 = vmatprep.subr.mxu0 0.0
  %282 = vmatpush1.msra.mxu0 0.0
  %283 = vmatprep.subr.mxu0 0.0
  %284 = vmatpush1.msra.mxu0 0.0
  %285 = vmatprep.subr.mxu0 0.0
  %286 = vmatpush1.msra.mxu0 0.0
  %287 = vmatprep.subr.mxu0 0.0
  %288 = vmatpush1.msra.mxu0 0.0
  %289 = vmatprep.subr.mxu0 0.0
  %290 = vmatpush1.msra.mxu0 0.0
  %291 = vmatprep.subr.mxu0 0.0
  %292 = vmatpush1.msra.mxu0 0.0
  %293 = vmatprep.subr.mxu0 0.0
  %294 = vmatpush1.msra.mxu0 0.0
  %295 = vmatprep.subr.mxu0 0.0
  %296 = vmatpush1.msra.mxu0 0.0
  %297 = vmatprep.subr.mxu0 0.0
  %298 = vmatpush1.msra.mxu0 0.0
  %299 = vmatprep.subr.mxu0 0.0
  %300 = vmatpush1.msra.mxu0 0.0
  %301 = vmatprep.subr.mxu0 0.0
  %302 = vmatpush1.msra.mxu0 0.0
  %303 = vmatprep.subr.mxu0 0.0
  %304 = vmatpush1.msra.mxu0 0.0
  %305 = vmatprep.subr.mxu0 0.0
  %306 = vmatpush1.msra.mxu0 0.0
  %307 = vmatprep.subr.mxu0 0.0
  %308 = vmatpush1.msra.mxu0 0.0
  %309 = vmatprep.subr.mxu0 0.0
  %310 = vmatpush1.msra.mxu0 0.0
  %311 = vmatprep.subr.mxu0 0.0
  %312 = vmatpush1.msra.mxu0 0.0
  %313 = vmatprep.subr.mxu0 0.0
  %314 = vmatpush1.msra.mxu0 0.0
  %315 = vmatprep.mubr.f32.mxu0 0.0
  %316 = vmatmul.mubr.f32.gmra.mrb[0].mxu0 %v216
  %v317 = vpop.f32.mrb[0].mxu0
  %v318 = vadd.f32 0.0, %v317
  %v319 = vpop.f32.mrb[0].mxu0
  %320 = vmatprep.mubr.f32.mxu0 0.0
  %321 = vmatmul.mubr.f32.gmra.mrb[0].mxu0 %v219
  %v322 = vpop.f32.mrb[0].mxu0
  %v323 = vadd.f32 0.0, %v322
  %v324 = vpop.f32.mrb[0].mxu0
  %325 = vmatprep.mubr.f32.mxu0 0.0
  %326 = vmatmul.mubr.f32.gmra.mrb[0].mxu0 %v222
  %v327 = vpop.f32.mrb[0].mxu0
  %v328 = vadd.f32 0.0, %v327
  %v329 = vpop.f32.mrb[0].mxu0
  %330 = vmatprep.mubr.f32.mxu0 0.0
  %331 = vmatmul.mubr.f32.gmra.mrb[0].mxu0 %v225
  %v332 = vpop.f32.mrb[0].mxu0
  %v333 = vadd.f32 0.0, %v332
  %v334 = vpop.f32.mrb[0].mxu0
  %335 = vmatprep.mubr.f32.mxu0 0.0
  %336 = vmatmul.mubr.f32.gmra.mrb[0].mxu0 %v228
  %v337 = vpop.f32.mrb[0].mxu0
  %v338 = vadd.f32 0.0, %v337
  %v339 = vpop.f32.mrb[0].mxu0
  %340 = vmatprep.mubr.f32.mxu0 0.0
  %341 = vmatmul.mubr.f32.gmra.mrb[0].mxu0 %v231
  %v342 = vpop.f32.mrb[0].mxu0
  %v343 = vadd.f32 0.0, %v342
  %v344 = vpop.f32.mrb[0].mxu0
  %345 = vmatprep.mubr.f32.mxu0 0.0
  %346 = vmatmul.mubr.f32.gmra.mrb[0].mxu0 %v234
  %v347 = vpop.f32.mrb[0].mxu0
  %v348 = vadd.f32 0.0, %v347
  %v349 = vpop.f32.mrb[0].mxu0
  %350 = vmatprep.mubr.f32.mxu0 0.0
  %351 = vmatmul.mubr.f32.gmra.mrb[0].mxu0 %v237
  %v352 = vpop.f32.mrb[0].mxu0
  %v353 = vadd.f32 0.0, %v352
  %v354 = vpop.f32.mrb[0].mxu0
  %355 = vmatprep.mubr.f32.mxu0 0.0
  %356 = vmatmul.mubr.f32.gmra.mrb[0].mxu0 %v240
  %v357 = vpop.f32.mrb[0].mxu0
  %v358 = vadd.f32 0.0, %v357
  %v359 = vpop.f32.mrb[0].mxu0
  %360 = vmatprep.mubr.f32.mxu0 0.0
  %361 = vmatmul.mubr.f32.gmra.mrb[0].mxu0 %v243
  %v362 = vpop.f32.mrb[0].mxu0
  %v363 = vadd.f32 0.0, %v362
  %v364 = vpop.f32.mrb[0].mxu0
  %365 = vmatprep.mubr.f32.mxu0 0.0
  %366 = vmatmul.mubr.f32.gmra.mrb[0].mxu0 %v246
  %v367 = vpop.f32.mrb[0].mxu0
  %v368 = vadd.f32 0.0, %v367
  %v369 = vpop.f32.mrb[0].mxu0
  %370 = vmatprep.mubr.f32.mxu0 0.0
  %371 = vmatmul.mubr.f32.gmra.mrb[0].mxu0 %v249
  %v372 = vpop.f32.mrb[0].mxu0
  %v373 = vadd.f32 0.0, %v372
  %v374 = vpop.f32.mrb[0].mxu0
  %375 = vdwg.mxu0
  %vm376 = vcmp.gt.f32.partialorder %v328, %v318
  %vm377 = vcmp.gt.f32.partialorder %v333, %v323
  %v378 = vsel %vm376, 1, 0
  %v379 = vsel %vm377, 1, 0
  %v380 = vcvt.s32.f32 %v378
  %v381 = vcvt.s32.f32 %v379
  %v383 = vsel %vm40, %v23, 0
  %385 = vmatprep.subr.mxu0 0.0
  %386 = vmatpush1.msra.mxu0 %v380
  %387 = vmatprep.subr.mxu0 0.0
  %388 = vmatpush1.msra.mxu0 %v381
  %389 = vmatprep.subr.mxu0 0.0
  %390 = vmatpush1.msra.mxu0 0.0
  %391 = vmatprep.subr.mxu0 0.0
  %392 = vmatpush1.msra.mxu0 0.0
  %393 = vmatprep.subr.mxu0 0.0
  %394 = vmatpush1.msra.mxu0 0.0
  %395 = vmatprep.subr.mxu0 0.0
  %396 = vmatpush1.msra.mxu0 0.0
  %397 = vmatprep.subr.mxu0 0.0
  %398 = vmatpush1.msra.mxu0 0.0
  %399 = vmatprep.subr.mxu0 0.0
  %400 = vmatpush1.msra.mxu0 0.0
  %401 = vmatprep.subr.mxu0 0.0
  %402 = vmatpush1.msra.mxu0 0.0
  %403 = vmatprep.subr.mxu0 0.0
  %404 = vmatpush1.msra.mxu0 0.0
  %405 = vmatprep.subr.mxu0 0.0
  %406 = vmatpush1.msra.mxu0 0.0
  %407 = vmatprep.subr.mxu0 0.0
  %408 = vmatpush1.msra.mxu0 0.0
  %409 = vmatprep.subr.mxu0 0.0
  %410 = vmatpush1.msra.mxu0 0.0
  %411 = vmatprep.subr.mxu0 0.0
  %412 = vmatpush1.msra.mxu0 0.0
  %413 = vmatprep.subr.mxu0 0.0
  %414 = vmatpush1.msra.mxu0 0.0
  %415 = vmatprep.subr.mxu0 0.0
  %416 = vmatpush1.msra.mxu0 0.0
  %417 = vmatprep.subr.mxu0 0.0
  %418 = vmatpush1.msra.mxu0 0.0
  %419 = vmatprep.subr.mxu0 0.0
  %420 = vmatpush1.msra.mxu0 0.0
  %421 = vmatprep.subr.mxu0 0.0
  %422 = vmatpush1.msra.mxu0 0.0
  %423 = vmatprep.subr.mxu0 0.0
  %424 = vmatpush1.msra.mxu0 0.0
  %425 = vmatprep.subr.mxu0 0.0
  %426 = vmatpush1.msra.mxu0 0.0
  %427 = vmatprep.subr.mxu0 0.0
  %428 = vmatpush1.msra.mxu0 0.0
  %429 = vmatprep.subr.mxu0 0.0
  %430 = vmatpush1.msra.mxu0 0.0
  %431 = vmatprep.subr.mxu0 0.0
  %432 = vmatpush1.msra.mxu0 0.0
  %433 = vmatprep.subr.mxu0 0.0
  %434 = vmatpush1.msra.mxu0 0.0
  %435 = vmatprep.subr.mxu0 0.0
  %436 = vmatpush1.msra.mxu0 0.0
  %437 = vmatprep.subr.mxu0 0.0
  %438 = vmatpush1.msra.mxu0 0.0
  %439 = vmatprep.subr.mxu0 0.0
  %440 = vmatpush1.msra.mxu0 0.0
  %441 = vmatprep.subr.mxu0 0.0
  %442 = vmatpush1.msra.mxu0 0.0
  %443 = vmatprep.subr.mxu0 0.0
  %444 = vmatpush1.msra.mxu0 0.0
  %445 = vmatprep.subr.mxu0 0.0
  %446 = vmatpush1.msra.mxu0 0.0
  %447 = vmatprep.subr.mxu0 0.0
  %448 = vmatpush1.msra.mxu0 0.0
  %449 = vmatprep.mubr.f32.mxu0 0.0
  %450 = vmatmul.mubr.f32.gmra.mrb[0].mxu0 %v383
  %v451 = vpop.f32.mrb[0].mxu0
  %v452 = vadd.f32 0.0, %v451
  %v453 = vpop.f32.mrb[0].mxu0
  %454 = vdwg.mxu0
  %vm455 = vcmask 124928
  %v456 = vsel %vm455, %v452, 0.0
  %457 = vadd.xlane.f32.xlu0 %v456
  %v458 = vpop.xlane.xlu0 %457
  %vm459 = vcmp.ge.f32.partialorder %v458, 0.3
  %vm460 = vcmp.le.f32.partialorder %v458, 0.6
  %vm461 = vmand %vm459, %vm460
  %vm462 = vcmp.ge.f32.partialorder %v458, 0.6
  %v463 = vsel %vm462, 1, 0
  %v464 = vrot.slane %v463, 1
  %vm465 = vcmp.ne.s32.totalorder %v464, 0
  %vm466 = vmand %vm461, %vm465
  %vm467 = vcmp.le.f32.partialorder %v458, 0.9
  %v468 = vsel %vm467, 1, 0
  %v469 = vrot.slane %v468, 1
  %vm470 = vcmp.ne.s32.totalorder %v469, 0
  %vm471 = vmand %vm466, %vm470
  %vm472 = vcmp.ge.f32.partialorder %v458, 0.4
  %v473 = vsel %vm472, 1, 0
  %v474 = vrot.slane %v473, 2
  %vm475 = vcmp.ne.s32.totalorder %v474, 0
  %vm476 = vmand %vm471, %vm475
  %v477 = vsel %vm460, 1, 0
  %v478 = vrot.slane %v477, 2
  %vm479 = vcmp.ne.s32.totalorder %v478, 0
  %vm480 = vmand %vm476, %vm479
  %v481 = vsel %vm480, 1, 0
  %v482 = vcvt.s32.f32 %v481
  %vm483 = vcmp.ge.f32.partialorder %v328, 0.2
  %vm484 = vcmp.ge.f32.partialorder %v333, 0.2
  %v485 = vadd.f32 %v328, 0.8
  %v486 = vadd.f32 %v333, 0.8
  %v487 = vsel %vm483, 1.0, %v485
  %v488 = vsel %vm484, 1.0, %v486
  %v489 = vmax.f32 %v487, 0.0
  %v490 = vmax.f32 %v488, 0.0
  %v491 = vmin.f32 %v489, 1.0
  %v492 = vmin.f32 %v490, 1.0
  %s494 = vtos %v482
  %v495 = vstv %s494
  %v497 = vmul.f32 %v495, %v491
  %v498 = vmul.f32 %v495, %v492
  %v499 = vsub.f32 1.0, %v482
  %s501 = vtos %v499
  %v502 = vstv %s501
  %v504 = vadd.f32 %v497, %v502
  %v505 = vadd.f32 %v498, %v502
  %v506 = vmul.f32 %v504, %v338
  %v507 = vmul.f32 %v505, %v343
  %v508 = vmul.f32 %v504, %v348
  %v509 = vmul.f32 %v505, %v353
  %v510 = vmul.f32 %v504, %v358
  %v511 = vmul.f32 %v505, %v363
  %v512 = vmul.f32 %v504, %v368
  %v513 = vmul.f32 %v505, %v373
  %vm514 = vcmask 523264
  %v516 = vsel %vm514, %v24, 0
  %518 = vmatprep.subr.mxu0 0.0
  %519 = vmatpush1.msra.mxu0 %v506
  %520 = vmatprep.subr.mxu0 0.0
  %521 = vmatpush1.msra.mxu0 %v507
  %522 = vmatprep.subr.mxu0 0.0
  %523 = vmatpush1.msra.mxu0 %v508
  %524 = vmatprep.subr.mxu0 0.0
  %525 = vmatpush1.msra.mxu0 %v509
  %526 = vmatprep.subr.mxu0 0.0
  %527 = vmatpush1.msra.mxu0 %v510
  %528 = vmatprep.subr.mxu0 0.0
  %529 = vmatpush1.msra.mxu0 %v511
  %530 = vmatprep.subr.mxu0 0.0
  %531 = vmatpush1.msra.mxu0 %v512
  %532 = vmatprep.subr.mxu0 0.0
  %533 = vmatpush1.msra.mxu0 %v513
  %534 = vmatprep.subr.mxu0 0.0
  %535 = vmatpush1.msra.mxu0 0.0
  %536 = vmatprep.subr.mxu0 0.0
  %537 = vmatpush1.msra.mxu0 0.0
  %538 = vmatprep.subr.mxu0 0.0
  %539 = vmatpush1.msra.mxu0 0.0
  %540 = vmatprep.subr.mxu0 0.0
  %541 = vmatpush1.msra.mxu0 0.0
  %542 = vmatprep.subr.mxu0 0.0
  %543 = vmatpush1.msra.mxu0 0.0
  %544 = vmatprep.subr.mxu0 0.0
  %545 = vmatpush1.msra.mxu0 0.0
  %546 = vmatprep.subr.mxu0 0.0
  %547 = vmatpush1.msra.mxu0 0.0
  %548 = vmatprep.subr.mxu0 0.0
  %549 = vmatpush1.msra.mxu0 0.0
  %550 = vmatprep.subr.mxu0 0.0
  %551 = vmatpush1.msra.mxu0 0.0
  %552 = vmatprep.subr.mxu0 0.0
  %553 = vmatpush1.msra.mxu0 0.0
  %554 = vmatprep.subr.mxu0 0.0
  %555 = vmatpush1.msra.mxu0 0.0
  %556 = vmatprep.subr.mxu0 0.0
  %557 = vmatpush1.msra.mxu0 0.0
  %558 = vmatprep.subr.mxu0 0.0
  %559 = vmatpush1.msra.mxu0 0.0
  %560 = vmatprep.subr.mxu0 0.0
  %561 = vmatpush1.msra.mxu0 0.0
  %562 = vmatprep.subr.mxu0 0.0
  %563 = vmatpush1.msra.mxu0 0.0
  %564 = vmatprep.subr.mxu0 0.0
  %565 = vmatpush1.msra.mxu0 0.0
  %566 = vmatprep.subr.mxu0 0.0
  %567 = vmatpush1.msra.mxu0 0.0
  %568 = vmatprep.subr.mxu0 0.0
  %569 = vmatpush1.msra.mxu0 0.0
  %570 = vmatprep.subr.mxu0 0.0
  %571 = vmatpush1.msra.mxu0 0.0
  %572 = vmatprep.subr.mxu0 0.0
  %573 = vmatpush1.msra.mxu0 0.0
  %574 = vmatprep.subr.mxu0 0.0
  %575 = vmatpush1.msra.mxu0 0.0
  %576 = vmatprep.subr.mxu0 0.0
  %577 = vmatpush1.msra.mxu0 0.0
  %578 = vmatprep.subr.mxu0 0.0
  %579 = vmatpush1.msra.mxu0 0.0
  %580 = vmatprep.subr.mxu0 0.0
  %581 = vmatpush1.msra.mxu0 0.0
  %582 = vmatprep.mubr.f32.mxu0 0.0
  %583 = vmatmul.mubr.f32.gmra.mrb[0].mxu0 %v516
  %v584 = vpop.f32.mrb[0].mxu0
  %v585 = vadd.f32 0.0, %v584
  %v586 = vpop.f32.mrb[0].mxu0
  %587 = vdwg.mxu0
  %v588 = vsel %vm40, %v585, 0.0
  %589 = vadd.xlane.f32.xlu0 %v588
  %v590 = vpop.xlane.xlu0 %589
  %v591 = vadd.f32 %v590, %v25
  %s592 = scalar_lea.vmem %s0, 96
  %v593 = vld [vmem:[%s592] sm:$0xff]
  %v594 = vld [vmem:[%s592 + $0x8] sm:$0xff]
  %v595 = vld [vmem:[%s592 + $0x10] sm:$0xff]
  %v596 = vld [vmem:[%s592 + $0x18] sm:$0xff]
  %v597 = vld [vmem:[%s592 + $0x20] sm:$0xff]
  %v598 = vld [vmem:[%s592 + $0x28] sm:$0xff]
  %v599 = vld [vmem:[%s592 + $0x30] sm:$0xff]
  %v600 = vld [vmem:[%s592 + $0x38] sm:$0xff]
  %v601 = vld [vmem:[%s592 + $0x40] sm:$0xff]
  %v602 = vld [vmem:[%s592 + $0x48] sm:$0xff]
  %v603 = vld [vmem:[%s592 + $0x50] sm:$0xff]
  %v604 = vld [vmem:[%s592 + $0x58] sm:$0xff]
  %s605 = scalar_lea.vmem %s2, 16
  %v606 = vld [vmem:[%s605] sm:$0xff]
  %v607 = vld [vmem:[%s605 + $0x8] sm:$0xff]
  %v609 = vsel %vm40, %v593, 0
  %v612 = vsel %vm40, %v594, 0
  %v615 = vsel %vm40, %v595, 0
  %v618 = vsel %vm40, %v596, 0
  %v621 = vsel %vm40, %v597, 0
  %v624 = vsel %vm40, %v598, 0
  %v627 = vsel %vm40, %v599, 0
  %v630 = vsel %vm40, %v600, 0
  %v633 = vsel %vm40, %v601, 0
  %v636 = vsel %vm40, %v602, 0
  %v639 = vsel %vm40, %v603, 0
  %v642 = vsel %vm40, %v604, 0
  %644 = vmatprep.subr.mxu0 0.0
  %645 = vmatpush1.msra.mxu0 %v606
  %646 = vmatprep.subr.mxu0 0.0
  %647 = vmatpush1.msra.mxu0 %v607
  %648 = vmatprep.subr.mxu0 0.0
  %649 = vmatpush1.msra.mxu0 0.0
  %650 = vmatprep.subr.mxu0 0.0
  %651 = vmatpush1.msra.mxu0 0.0
  %652 = vmatprep.subr.mxu0 0.0
  %653 = vmatpush1.msra.mxu0 0.0
  %654 = vmatprep.subr.mxu0 0.0
  %655 = vmatpush1.msra.mxu0 0.0
  %656 = vmatprep.subr.mxu0 0.0
  %657 = vmatpush1.msra.mxu0 0.0
  %658 = vmatprep.subr.mxu0 0.0
  %659 = vmatpush1.msra.mxu0 0.0
  %660 = vmatprep.subr.mxu0 0.0
  %661 = vmatpush1.msra.mxu0 0.0
  %662 = vmatprep.subr.mxu0 0.0
  %663 = vmatpush1.msra.mxu0 0.0
  %664 = vmatprep.subr.mxu0 0.0
  %665 = vmatpush1.msra.mxu0 0.0
  %666 = vmatprep.subr.mxu0 0.0
  %667 = vmatpush1.msra.mxu0 0.0
  %668 = vmatprep.subr.mxu0 0.0
  %669 = vmatpush1.msra.mxu0 0.0
  %670 = vmatprep.subr.mxu0 0.0
  %671 = vmatpush1.msra.mxu0 0.0
  %672 = vmatprep.subr.mxu0 0.0
  %673 = vmatpush1.msra.mxu0 0.0
  %674 = vmatprep.subr.mxu0 0.0
  %675 = vmatpush1.msra.mxu0 0.0
  %676 = vmatprep.subr.mxu0 0.0
  %677 = vmatpush1.msra.mxu0 0.0
  %678 = vmatprep.subr.mxu0 0.0
  %679 = vmatpush1.msra.mxu0 0.0
  %680 = vmatprep.subr.mxu0 0.0
  %681 = vmatpush1.msra.mxu0 0.0
  %682 = vmatprep.subr.mxu0 0.0
  %683 = vmatpush1.msra.mxu0 0.0
  %684 = vmatprep.subr.mxu0 0.0
  %685 = vmatpush1.msra.mxu0 0.0
  %686 = vmatprep.subr.mxu0 0.0
  %687 = vmatpush1.msra.mxu0 0.0
  %688 = vmatprep.subr.mxu0 0.0
  %689 = vmatpush1.msra.mxu0 0.0
  %690 = vmatprep.subr.mxu0 0.0
  %691 = vmatpush1.msra.mxu0 0.0
  %692 = vmatprep.subr.mxu0 0.0
  %693 = vmatpush1.msra.mxu0 0.0
  %694 = vmatprep.subr.mxu0 0.0
  %695 = vmatpush1.msra.mxu0 0.0
  %696 = vmatprep.subr.mxu0 0.0
  %697 = vmatpush1.msra.mxu0 0.0
  %698 = vmatprep.subr.mxu0 0.0
  %699 = vmatpush1.msra.mxu0 0.0
  %700 = vmatprep.subr.mxu0 0.0
  %701 = vmatpush1.msra.mxu0 0.0
  %702 = vmatprep.subr.mxu0 0.0
  %703 = vmatpush1.msra.mxu0 0.0
  %704 = vmatprep.subr.mxu0 0.0
  %705 = vmatpush1.msra.mxu0 0.0
  %706 = vmatprep.subr.mxu0 0.0
  %707 = vmatpush1.msra.mxu0 0.0
  %708 = vmatprep.mubr.f32.mxu0 0.0
  %709 = vmatmul.mubr.f32.gmra.mrb[0].mxu0 %v609
  %v710 = vpop.f32.mrb[0].mxu0
  %v711 = vadd.f32 0.0, %v710
  %v712 = vpop.f32.mrb[0].mxu0
  %713 = vmatprep.mubr.f32.mxu0 0.0
  %714 = vmatmul.mubr.f32.gmra.mrb[0].mxu0 %v612
  %v715 = vpop.f32.mrb[0].mxu0
  %v716 = vadd.f32 0.0, %v715
  %v717 = vpop.f32.mrb[0].mxu0
  %718 = vmatprep.mubr.f32.mxu0 0.0
  %719 = vmatmul.mubr.f32.gmra.mrb[0].mxu0 %v615
  %v720 = vpop.f32.mrb[0].mxu0
  %v721 = vadd.f32 0.0, %v720
  %v722 = vpop.f32.mrb[0].mxu0
  %723 = vmatprep.mubr.f32.mxu0 0.0
  %724 = vmatmul.mubr.f32.gmra.mrb[0].mxu0 %v618
  %v725 = vpop.f32.mrb[0].mxu0
  %v726 = vadd.f32 0.0, %v725
  %v727 = vpop.f32.mrb[0].mxu0
  %728 = vmatprep.mubr.f32.mxu0 0.0
  %729 = vmatmul.mubr.f32.gmra.mrb[0].mxu0 %v621
  %v730 = vpop.f32.mrb[0].mxu0
  %v731 = vadd.f32 0.0, %v730
  %v732 = vpop.f32.mrb[0].mxu0
  %733 = vmatprep.mubr.f32.mxu0 0.0
  %734 = vmatmul.mubr.f32.gmra.mrb[0].mxu0 %v624
  %v735 = vpop.f32.mrb[0].mxu0
  %v736 = vadd.f32 0.0, %v735
  %v737 = vpop.f32.mrb[0].mxu0
  %738 = vmatprep.mubr.f32.mxu0 0.0
  %739 = vmatmul.mubr.f32.gmra.mrb[0].mxu0 %v627
  %v740 = vpop.f32.mrb[0].mxu0
  %v741 = vadd.f32 0.0, %v740
  %v742 = vpop.f32.mrb[0].mxu0
  %743 = vmatprep.mubr.f32.mxu0 0.0
  %744 = vmatmul.mubr.f32.gmra.mrb[0].mxu0 %v630
  %v745 = vpop.f32.mrb[0].mxu0
  %v746 = vadd.f32 0.0, %v745
  %v747 = vpop.f32.mrb[0].mxu0
  %748 = vmatprep.mubr.f32.mxu0 0.0
  %749 = vmatmul.mubr.f32.gmra.mrb[0].mxu0 %v633
  %v750 = vpop.f32.mrb[0].mxu0
  %v751 = vadd.f32 0.0, %v750
  %v752 = vpop.f32.mrb[0].mxu0
  %753 = vmatprep.mubr.f32.mxu0 0.0
  %754 = vmatmul.mubr.f32.gmra.mrb[0].mxu0 %v636
  %v755 = vpop.f32.mrb[0].mxu0
  %v756 = vadd.f32 0.0, %v755
  %v757 = vpop.f32.mrb[0].mxu0
  %758 = vmatprep.mubr.f32.mxu0 0.0
  %759 = vmatmul.mubr.f32.gmra.mrb[0].mxu0 %v639
  %v760 = vpop.f32.mrb[0].mxu0
  %v761 = vadd.f32 0.0, %v760
  %v762 = vpop.f32.mrb[0].mxu0
  %763 = vmatprep.mubr.f32.mxu0 0.0
  %764 = vmatmul.mubr.f32.gmra.mrb[0].mxu0 %v642
  %v765 = vpop.f32.mrb[0].mxu0
  %v766 = vadd.f32 0.0, %v765
  %v767 = vpop.f32.mrb[0].mxu0
  %768 = vdwg.mxu0
  %s769 = scalar_lea.vmem %s1, 96
  %v770 = vld [vmem:[%s769] sm:$0xff]
  %v771 = vld [vmem:[%s769 + $0x8] sm:$0xff]
  %v772 = vld [vmem:[%s769 + $0x10] sm:$0xff]
  %v773 = vld [vmem:[%s769 + $0x18] sm:$0xff]
  %v774 = vld [vmem:[%s769 + $0x20] sm:$0xff]
  %v775 = vld [vmem:[%s769 + $0x28] sm:$0xff]
  %v776 = vld [vmem:[%s769 + $0x30] sm:$0xff]
  %v777 = vld [vmem:[%s769 + $0x38] sm:$0xff]
  %v778 = vld [vmem:[%s769 + $0x40] sm:$0xff]
  %v779 = vld [vmem:[%s769 + $0x48] sm:$0xff]
  %v780 = vld [vmem:[%s769 + $0x50] sm:$0xff]
  %v781 = vld [vmem:[%s769 + $0x58] sm:$0xff]
  %v783 = vsel %vm214, %v770, 0
  %v786 = vsel %vm214, %v771, 0
  %v789 = vsel %vm214, %v772, 0
  %v792 = vsel %vm214, %v773, 0
  %v795 = vsel %vm214, %v774, 0
  %v798 = vsel %vm214, %v775, 0
  %v801 = vsel %vm214, %v776, 0
  %v804 = vsel %vm214, %v777, 0
  %v807 = vsel %vm214, %v778, 0
  %v810 = vsel %vm214, %v779, 0
  %v813 = vsel %vm214, %v780, 0
  %v816 = vsel %vm214, %v781, 0
  %818 = vmatprep.subr.mxu0 0.0
  %819 = vmatpush1.msra.mxu0 %v711
  %820 = vmatprep.subr.mxu0 0.0
  %821 = vmatpush1.msra.mxu0 %v716
  %822 = vmatprep.subr.mxu0 0.0
  %823 = vmatpush1.msra.mxu0 %v721
  %824 = vmatprep.subr.mxu0 0.0
  %825 = vmatpush1.msra.mxu0 %v726
  %826 = vmatprep.subr.mxu0 0.0
  %827 = vmatpush1.msra.mxu0 %v731
  %828 = vmatprep.subr.mxu0 0.0
  %829 = vmatpush1.msra.mxu0 %v736
  %830 = vmatprep.subr.mxu0 0.0
  %831 = vmatpush1.msra.mxu0 %v741
  %832 = vmatprep.subr.mxu0 0.0
  %833 = vmatpush1.msra.mxu0 %v746
  %834 = vmatprep.subr.mxu0 0.0
  %835 = vmatpush1.msra.mxu0 %v751
  %836 = vmatprep.subr.mxu0 0.0
  %837 = vmatpush1.msra.mxu0 %v756
  %838 = vmatprep.subr.mxu0 0.0
  %839 = vmatpush1.msra.mxu0 %v761
  %840 = vmatprep.subr.mxu0 0.0
  %841 = vmatpush1.msra.mxu0 %v766
  %842 = vmatprep.subr.mxu0 0.0
  %843 = vmatpush1.msra.mxu0 0.0
  %844 = vmatprep.subr.mxu0 0.0
  %845 = vmatpush1.msra.mxu0 0.0
  %846 = vmatprep.subr.mxu0 0.0
  %847 = vmatpush1.msra.mxu0 0.0
  %848 = vmatprep.subr.mxu0 0.0
  %849 = vmatpush1.msra.mxu0 0.0
  %850 = vmatprep.subr.mxu0 0.0
  %851 = vmatpush1.msra.mxu0 0.0
  %852 = vmatprep.subr.mxu0 0.0
  %853 = vmatpush1.msra.mxu0 0.0
  %854 = vmatprep.subr.mxu0 0.0
  %855 = vmatpush1.msra.mxu0 0.0
  %856 = vmatprep.subr.mxu0 0.0
  %857 = vmatpush1.msra.mxu0 0.0
  %858 = vmatprep.subr.mxu0 0.0
  %859 = vmatpush1.msra.mxu0 0.0
  %860 = vmatprep.subr.mxu0 0.0
  %861 = vmatpush1.msra.mxu0 0.0
  %862 = vmatprep.subr.mxu0 0.0
  %863 = vmatpush1.msra.mxu0 0.0
  %864 = vmatprep.subr.mxu0 0.0
  %865 = vmatpush1.msra.mxu0 0.0
  %866 = vmatprep.subr.mxu0 0.0
  %867 = vmatpush1.msra.mxu0 0.0
  %868 = vmatprep.subr.mxu0 0.0
  %869 = vmatpush1.msra.mxu0 0.0
  %870 = vmatprep.subr.mxu0 0.0
  %871 = vmatpush1.msra.mxu0 0.0
  %872 = vmatprep.subr.mxu0 0.0
  %873 = vmatpush1.msra.mxu0 0.0
  %874 = vmatprep.subr.mxu0 0.0
  %875 = vmatpush1.msra.mxu0 0.0
  %876 = vmatprep.subr.mxu0 0.0
  %877 = vmatpush1.msra.mxu0 0.0
  %878 = vmatprep.subr.mxu0 0.0
  %879 = vmatpush1.msra.mxu0 0.0
  %880 = vmatprep.subr.mxu0 0.0
  %881 = vmatpush1.msra.mxu0 0.0
  %882 = vmatprep.mubr.f32.mxu0 0.0
  %883 = vmatmul.mubr.f32.gmra.mrb[0].mxu0 %v783
  %v884 = vpop.f32.mrb[0].mxu0
  %v885 = vadd.f32 0.0, %v884
  %v886 = vpop.f32.mrb[0].mxu0
  %887 = vmatprep.mubr.f32.mxu0 0.0
  %888 = vmatmul.mubr.f32.gmra.mrb[0].mxu0 %v786
  %v889 = vpop.f32.mrb[0].mxu0
  %v890 = vadd.f32 0.0, %v889
  %v891 = vpop.f32.mrb[0].mxu0
  %892 = vmatprep.mubr.f32.mxu0 0.0
  %893 = vmatmul.mubr.f32.gmra.mrb[0].mxu0 %v789
  %v894 = vpop.f32.mrb[0].mxu0
  %v895 = vadd.f32 0.0, %v894
  %v896 = vpop.f32.mrb[0].mxu0
  %897 = vmatprep.mubr.f32.mxu0 0.0
  %898 = vmatmul.mubr.f32.gmra.mrb[0].mxu0 %v792
  %v899 = vpop.f32.mrb[0].mxu0
  %v900 = vadd.f32 0.0, %v899
  %v901 = vpop.f32.mrb[0].mxu0
  %902 = vmatprep.mubr.f32.mxu0 0.0
  %903 = vmatmul.mubr.f32.gmra.mrb[0].mxu0 %v795
  %v904 = vpop.f32.mrb[0].mxu0
  %v905 = vadd.f32 0.0, %v904
  %v906 = vpop.f32.mrb[0].mxu0
  %907 = vmatprep.mubr.f32.mxu0 0.0
  %908 = vmatmul.mubr.f32.gmra.mrb[0].mxu0 %v798
  %v909 = vpop.f32.mrb[0].mxu0
  %v910 = vadd.f32 0.0, %v909
  %v911 = vpop.f32.mrb[0].mxu0
  %912 = vmatprep.mubr.f32.mxu0 0.0
  %913 = vmatmul.mubr.f32.gmra.mrb[0].mxu0 %v801
  %v914 = vpop.f32.mrb[0].mxu0
  %v915 = vadd.f32 0.0, %v914
  %v916 = vpop.f32.mrb[0].mxu0
  %917 = vmatprep.mubr.f32.mxu0 0.0
  %918 = vmatmul.mubr.f32.gmra.mrb[0].mxu0 %v804
  %v919 = vpop.f32.mrb[0].mxu0
  %v920 = vadd.f32 0.0, %v919
  %v921 = vpop.f32.mrb[0].mxu0
  %922 = vmatprep.mubr.f32.mxu0 0.0
  %923 = vmatmul.mubr.f32.gmra.mrb[0].mxu0 %v807
  %v924 = vpop.f32.mrb[0].mxu0
  %v925 = vadd.f32 0.0, %v924
  %v926 = vpop.f32.mrb[0].mxu0
  %927 = vmatprep.mubr.f32.mxu0 0.0
  %928 = vmatmul.mubr.f32.gmra.mrb[0].mxu0 %v810
  %v929 = vpop.f32.mrb[0].mxu0
  %v930 = vadd.f32 0.0, %v929
  %v931 = vpop.f32.mrb[0].mxu0
  %932 = vmatprep.mubr.f32.mxu0 0.0
  %933 = vmatmul.mubr.f32.gmra.mrb[0].mxu0 %v813
  %v934 = vpop.f32.mrb[0].mxu0
  %v935 = vadd.f32 0.0, %v934
  %v936 = vpop.f32.mrb[0].mxu0
  %937 = vmatprep.mubr.f32.mxu0 0.0
  %938 = vmatmul.mubr.f32.gmra.mrb[0].mxu0 %v816
  %v939 = vpop.f32.mrb[0].mxu0
  %v940 = vadd.f32 0.0, %v939
  %v941 = vpop.f32.mrb[0].mxu0
  %942 = vdwg.mxu0
  %vm943 = vcmp.gt.f32.partialorder %v895, %v885
  %vm944 = vcmp.gt.f32.partialorder %v900, %v890
  %v945 = vsel %vm943, 1, 0
  %v946 = vsel %vm944, 1, 0
  %v947 = vcvt.s32.f32 %v945
  %v948 = vcvt.s32.f32 %v946
  %949 = vmatprep.subr.mxu0 0.0
  %950 = vmatpush1.msra.mxu0 %v947
  %951 = vmatprep.subr.mxu0 0.0
  %952 = vmatpush1.msra.mxu0 %v948
  %953 = vmatprep.subr.mxu0 0.0
  %954 = vmatpush1.msra.mxu0 0.0
  %955 = vmatprep.subr.mxu0 0.0
  %956 = vmatpush1.msra.mxu0 0.0
  %957 = vmatprep.subr.mxu0 0.0
  %958 = vmatpush1.msra.mxu0 0.0
  %959 = vmatprep.subr.mxu0 0.0
  %960 = vmatpush1.msra.mxu0 0.0
  %961 = vmatprep.subr.mxu0 0.0
  %962 = vmatpush1.msra.mxu0 0.0
  %963 = vmatprep.subr.mxu0 0.0
  %964 = vmatpush1.msra.mxu0 0.0
  %965 = vmatprep.subr.mxu0 0.0
  %966 = vmatpush1.msra.mxu0 0.0
  %967 = vmatprep.subr.mxu0 0.0
  %968 = vmatpush1.msra.mxu0 0.0
  %969 = vmatprep.subr.mxu0 0.0
  %970 = vmatpush1.msra.mxu0 0.0
  %971 = vmatprep.subr.mxu0 0.0
  %972 = vmatpush1.msra.mxu0 0.0
  %973 = vmatprep.subr.mxu0 0.0
  %974 = vmatpush1.msra.mxu0 0.0
  %975 = vmatprep.subr.mxu0 0.0
  %976 = vmatpush1.msra.mxu0 0.0
  %977 = vmatprep.subr.mxu0 0.0
  %978 = vmatpush1.msra.mxu0 0.0
  %979 = vmatprep.subr.mxu0 0.0
  %980 = vmatpush1.msra.mxu0 0.0
  %981 = vmatprep.subr.mxu0 0.0
  %982 = vmatpush1.msra.mxu0 0.0
  %983 = vmatprep.subr.mxu0 0.0
  %984 = vmatpush1.msra.mxu0 0.0
  %985 = vmatprep.subr.mxu0 0.0
  %986 = vmatpush1.msra.mxu0 0.0
  %987 = vmatprep.subr.mxu0 0.0
  %988 = vmatpush1.msra.mxu0 0.0
  %989 = vmatprep.subr.mxu0 0.0
  %990 = vmatpush1.msra.mxu0 0.0
  %991 = vmatprep.subr.mxu0 0.0
  %992 = vmatpush1.msra.mxu0 0.0
  %993 = vmatprep.subr.mxu0 0.0
  %994 = vmatpush1.msra.mxu0 0.0
  %995 = vmatprep.subr.mxu0 0.0
  %996 = vmatpush1.msra.mxu0 0.0
  %997 = vmatprep.subr.mxu0 0.0
  %998 = vmatpush1.msra.mxu0 0.0
  %999 = vmatprep.subr.mxu0 0.0
  %1000 = vmatpush1.msra.mxu0 0.0
  %1001 = vmatprep.subr.mxu0 0.0
  %1002 = vmatpush1.msra.mxu0 0.0
  %1003 = vmatprep.subr.mxu0 0.0
  %1004 = vmatpush1.msra.mxu0 0.0
  %1005 = vmatprep.subr.mxu0 0.0
  %1006 = vmatpush1.msra.mxu0 0.0
  %1007 = vmatprep.subr.mxu0 0.0
  %1008 = vmatpush1.msra.mxu0 0.0
  %1009 = vmatprep.subr.mxu0 0.0
  %1010 = vmatpush1.msra.mxu0 0.0
  %1011 = vmatprep.subr.mxu0 0.0
  %1012 = vmatpush1.msra.mxu0 0.0
  %1013 = vmatprep.mubr.f32.mxu0 0.0
  %1014 = vmatmul.mubr.f32.gmra.mrb[0].mxu0 %v383
  %v1015 = vpop.f32.mrb[0].mxu0
  %v1016 = vadd.f32 0.0, %v1015
  %v1017 = vpop.f32.mrb[0].mxu0
  %1018 = vdwg.mxu0
  %v1019 = vsel %vm455, %v1016, 0.0
  %1020 = vadd.xlane.f32.xlu0 %v1019
  %v1021 = vpop.xlane.xlu0 %1020
  %vm1022 = vcmp.ge.f32.partialorder %v1021, 0.3
  %vm1023 = vcmp.le.f32.partialorder %v1021, 0.6
  %vm1024 = vmand %vm1022, %vm1023
  %vm1025 = vcmp.ge.f32.partialorder %v1021, 0.6
  %v1026 = vsel %vm1025, 1, 0
  %v1027 = vrot.slane %v1026, 1
  %vm1028 = vcmp.ne.s32.totalorder %v1027, 0
  %vm1029 = vmand %vm1024, %vm1028
  %vm1030 = vcmp.le.f32.partialorder %v1021, 0.9
  %v1031 = vsel %vm1030, 1, 0
  %v1032 = vrot.slane %v1031, 1
  %vm1033 = vcmp.ne.s32.totalorder %v1032, 0
  %vm1034 = vmand %vm1029, %vm1033
  %vm1035 = vcmp.ge.f32.partialorder %v1021, 0.4
  %v1036 = vsel %vm1035, 1, 0
  %v1037 = vrot.slane %v1036, 2
  %vm1038 = vcmp.ne.s32.totalorder %v1037, 0
  %vm1039 = vmand %vm1034, %vm1038
  %v1040 = vsel %vm1023, 1, 0
  %v1041 = vrot.slane %v1040, 2
  %vm1042 = vcmp.ne.s32.totalorder %v1041, 0
  %vm1043 = vmand %vm1039, %vm1042
  %v1044 = vsel %vm1043, 1, 0
  %v1045 = vcvt.s32.f32 %v1044
  %vm1046 = vcmp.ge.f32.partialorder %v895, 0.2
  %vm1047 = vcmp.ge.f32.partialorder %v900, 0.2
  %v1048 = vadd.f32 %v895, 0.8
  %v1049 = vadd.f32 %v900, 0.8
  %v1050 = vsel %vm1046, 1.0, %v1048
  %v1051 = vsel %vm1047, 1.0, %v1049
  %v1052 = vmax.f32 %v1050, 0.0
  %v1053 = vmax.f32 %v1051, 0.0
  %v1054 = vmin.f32 %v1052, 1.0
  %v1055 = vmin.f32 %v1053, 1.0
  %s1057 = vtos %v1045
  %v1058 = vstv %s1057
  %v1060 = vmul.f32 %v1058, %v1054
  %v1061 = vmul.f32 %v1058, %v1055
  %v1062 = vsub.f32 1.0, %v1045
  %s1064 = vtos %v1062
  %v1065 = vstv %s1064
  %v1067 = vadd.f32 %v1060, %v1065
  %v1068 = vadd.f32 %v1061, %v1065
  %v1069 = vmul.f32 %v1067, %v905
  %v1070 = vmul.f32 %v1068, %v910
  %v1071 = vmul.f32 %v1067, %v915
  %v1072 = vmul.f32 %v1068, %v920
  %v1073 = vmul.f32 %v1067, %v925
  %v1074 = vmul.f32 %v1068, %v930
  %v1075 = vmul.f32 %v1067, %v935
  %v1076 = vmul.f32 %v1068, %v940
  %1077 = vmatprep.subr.mxu0 0.0
  %1078 = vmatpush1.msra.mxu0 %v1069
  %1079 = vmatprep.subr.mxu0 0.0
  %1080 = vmatpush1.msra.mxu0 %v1070
  %1081 = vmatprep.subr.mxu0 0.0
  %1082 = vmatpush1.msra.mxu0 %v1071
  %1083 = vmatprep.subr.mxu0 0.0
  %1084 = vmatpush1.msra.mxu0 %v1072
  %1085 = vmatprep.subr.mxu0 0.0
  %1086 = vmatpush1.msra.mxu0 %v1073
  %1087 = vmatprep.subr.mxu0 0.0
  %1088 = vmatpush1.msra.mxu0 %v1074
  %1089 = vmatprep.subr.mxu0 0.0
  %1090 = vmatpush1.msra.mxu0 %v1075
  %1091 = vmatprep.subr.mxu0 0.0
  %1092 = vmatpush1.msra.mxu0 %v1076
  %1093 = vmatprep.subr.mxu0 0.0
  %1094 = vmatpush1.msra.mxu0 0.0
  %1095 = vmatprep.subr.mxu0 0.0
  %1096 = vmatpush1.msra.mxu0 0.0
  %1097 = vmatprep.subr.mxu0 0.0
  %1098 = vmatpush1.msra.mxu0 0.0
  %1099 = vmatprep.subr.mxu0 0.0
  %1100 = vmatpush1.msra.mxu0 0.0
  %1101 = vmatprep.subr.mxu0 0.0
  %1102 = vmatpush1.msra.mxu0 0.0
  %1103 = vmatprep.subr.mxu0 0.0
  %1104 = vmatpush1.msra.mxu0 0.0
  %1105 = vmatprep.subr.mxu0 0.0
  %1106 = vmatpush1.msra.mxu0 0.0
  %1107 = vmatprep.subr.mxu0 0.0
  %1108 = vmatpush1.msra.mxu0 0.0
  %1109 = vmatprep.subr.mxu0 0.0
  %1110 = vmatpush1.msra.mxu0 0.0
  %1111 = vmatprep.subr.mxu0 0.0
  %1112 = vmatpush1.msra.mxu0 0.0
  %1113 = vmatprep.subr.mxu0 0.0
  %1114 = vmatpush1.msra.mxu0 0.0
  %1115 = vmatprep.subr.mxu0 0.0
  %1116 = vmatpush1.msra.mxu0 0.0
  %1117 = vmatprep.subr.mxu0 0.0
  %1118 = vmatpush1.msra.mxu0 0.0
  %1119 = vmatprep.subr.mxu0 0.0
  %1120 = vmatpush1.msra.mxu0 0.0
  %1121 = vmatprep.subr.mxu0 0.0
  %1122 = vmatpush1.msra.mxu0 0.0
  %1123 = vmatprep.subr.mxu0 0.0
  %1124 = vmatpush1.msra.mxu0 0.0
  %1125 = vmatprep.subr.mxu0 0.0
  %1126 = vmatpush1.msra.mxu0 0.0
  %1127 = vmatprep.subr.mxu0 0.0
  %1128 = vmatpush1.msra.mxu0 0.0
  %1129 = vmatprep.subr.mxu0 0.0
  %1130 = vmatpush1.msra.mxu0 0.0
  %1131 = vmatprep.subr.mxu0 0.0
  %1132 = vmatpush1.msra.mxu0 0.0
  %1133 = vmatprep.subr.mxu0 0.0
  %1134 = vmatpush1.msra.mxu0 0.0
  %1135 = vmatprep.subr.mxu0 0.0
  %1136 = vmatpush1.msra.mxu0 0.0
  %1137 = vmatprep.subr.mxu0 0.0
  %1138 = vmatpush1.msra.mxu0 0.0
  %1139 = vmatprep.subr.mxu0 0.0
  %1140 = vmatpush1.msra.mxu0 0.0
  %1141 = vmatprep.mubr.f32.mxu0 0.0
  %1142 = vmatmul.mubr.f32.gmra.mrb[0].mxu0 %v516
  %v1143 = vpop.f32.mrb[0].mxu0
  %v1144 = vadd.f32 0.0, %v1143
  %v1145 = vpop.f32.mrb[0].mxu0
  %1146 = vdwg.mxu0
  %v1147 = vsel %vm40, %v1144, 0.0
  %1148 = vadd.xlane.f32.xlu0 %v1147
  %v1149 = vpop.xlane.xlu0 %1148
  %v1150 = vadd.f32 %v1149, %v25
  %1152 = vrot.lane.b32.xlu0 %v1150, 1
  %v1153 = vpop.permute.xlu0 %1152
  %vm1155 = vcmask 7168
  %v1156 = vsel %vm1155, %v591, %v1153
  %vm1157 = vcmask 15360
  %1158 = vst.msk [vmem:[%s6] sm:$0xff] %vm1157, %v1156
  // Predicated region
  $region26: #{rbsg_forward.3} parent=0 // pred_check
    _
  $region27: #{rbsg_forward.3} parent=0 // pred_check_branch
    %1160 = sbr.rel (0) target = $region29
  $region28: #{rbsg_forward.3} parent=0 // pred_region
    _
  $region29: #{rbsg_forward.3} parent=0 // pred_fallthru
    _
  // Predicated region
  $region30: #{rbsg_forward.3} parent=0 // pred_check
    _
  $region31: #{rbsg_forward.3} parent=0 // pred_check_branch
    %1162 = sbr.rel (0) target = $region33
  $region32: #{rbsg_forward.3} parent=0 // pred_region
    _
  $region33: #{rbsg_forward.3} parent=0 // pred_fallthru
    _

</llo_original>
